<compile_context>
chip_gen: v5e
topology: v5e:2x2
jax: 0.10.0
libtpu: 0.0.40
codegen_flags: <defaults>
</compile_context>

<pallas_src>
import math
from functools import partial

import jax
import jax.numpy as jnp
from jax.experimental import pallas as pl
from jax.experimental.pallas import tpu as pltpu


def _round_up(a, m):
    return (a + m - 1) // m * m


def _occupancy_kernel(x_ref, w_first_ref, w_rest_ref, o_ref, *,
                      num_rest, w_p, outc):
    # x_ref:       (inc_p, tile)  features on sublanes, points on lanes;
    #              row `inc` is the homogeneous 1.0 row (folds in b0).
    # w_first_ref: (w_p, inc_p)   first layer weight with b0 in column `inc`.
    # w_rest_ref:  (num_rest*w_p, w_p+1)  per layer: [:, :w_p] weight,
    #              [:, w_p] bias.  Layers 0..num_rest-2 are sin-activated
    #              hidden layers, layer num_rest-1 is the (linear) sigma layer.
    # o_ref:       (outc, tile)   lane-dense output slab.
    h = x_ref[...]                                             # (inc_p, tile)
    w0 = w_first_ref[...]                                      # (w_p, inc_p)
    h = jnp.sin(jnp.dot(w0, h, preferred_element_type=jnp.float32))

    rest = w_rest_ref[...]                                     # (num_rest*w_p, w_p+1)
    for l in range(num_rest):                                  # statically unrolled
        blk = rest[l * w_p:(l + 1) * w_p, :]
        w = blk[:, :w_p]                                       # (w_p, w_p)
        b = blk[:, w_p:w_p + 1]                                # (w_p, 1) lane-broadcast
        z = jnp.dot(w, h, preferred_element_type=jnp.float32) + b
        h = jnp.sin(z) if l < num_rest - 1 else z              # sigma layer: no act

    o_ref[...] = h[:outc, :].astype(o_ref.dtype)               # unmasked lane-dense store


def occupancy_map(x, params, *, tile_cols=16384):
    """x: (..., inc) float32.  Returns (..., outc) float32."""
    w0, b0, wh, bh, ws, bs = params           # PyTorch layout: weight = (out, in)
    W, inc = w0.shape
    outc = ws.shape[0]
    num_hidden = wh.shape[0]                  # D-1 hidden (freq_init) layers
    num_rest = num_hidden + 1                 # hidden layers + sigma layer

    lead_shape = x.shape[:-1]
    n = int(math.prod(lead_shape)) if lead_shape else 1
    x2 = x.reshape(n, inc).astype(jnp.float32)

    inc_h = inc + 1                           # homogeneous coordinate (for b0)
    inc_p = _round_up(inc_h, 8)
    w_p = _round_up(W, 8)

    # ---- tile / grid selection -------------------------------------------
    # Large tiles amortize per-step overhead; >= 2 (even) steps keep both of
    # v7x's TensorCores busy under dimension_semantics=("parallel",).
    max_tile = _round_up(tile_cols, 128)
    n128 = _round_up(n, 128)
    nsteps = max(2, pl.cdiv(n128, max_tile)) if n128 >= 256 else 1
    if nsteps > 2 and nsteps % 2 == 1:
        nsteps += 1
    tile = _round_up(pl.cdiv(n128, nsteps), 128)
    n_pad = nsteps * tile

    # ---- feature-major input (pad + ones-row + transpose fuse under jit) ---
    ones = jnp.ones((n, 1), jnp.float32)
    xh = jnp.concatenate([x2, ones], axis=1)                     # (n, inc+1)
    xt = jnp.pad(xh, ((0, n_pad - n), (0, inc_p - inc_h))).T     # (inc_p, n_pad)

    # ---- pack weights into two small operands -----------------------------
    w_first = jnp.zeros((w_p, inc_p), jnp.float32)
    w_first = w_first.at[:W, :inc].set(w0.astype(jnp.float32))
    w_first = w_first.at[:W, inc].set(b0.astype(jnp.float32))    # b0 folded

    w_rest = jnp.zeros((num_rest * w_p, w_p + 1), jnp.float32)
    for i in range(num_hidden):
        w_rest = w_rest.at[i * w_p:i * w_p + W, :W].set(wh[i].astype(jnp.float32))
        w_rest = w_rest.at[i * w_p:i * w_p + W, w_p].set(bh[i].astype(jnp.float32))
    s = num_hidden * w_p
    w_rest = w_rest.at[s:s + outc, :W].set(ws.astype(jnp.float32))
    w_rest = w_rest.at[s:s + outc, w_p].set(bs.astype(jnp.float32))

    # ---- specs / cost / VMEM budget ---------------------------------------
    in_specs = [
        pl.BlockSpec((inc_p, tile), lambda j: (0, j)),           # x tile
        pl.BlockSpec((w_p, inc_p), lambda j: (0, 0)),            # first layer
        pl.BlockSpec((num_rest * w_p, w_p + 1), lambda j: (0, 0)),  # packed rest
    ]
    out_spec = pl.BlockSpec((outc, tile), lambda j: (0, j))

    # Rough per-step VMEM need (double-buffered blocks + a few (w_p, tile)
    # f32 intermediates); clamp to [32 MiB, 48 MiB] (safe on v5e/v6e/v7x).
    vmem_need = 4 * tile * (2 * inc_p + 2 * outc + 4 * w_p) + (2 << 20)
    vmem_limit = min(max(vmem_need, 32 << 20), 48 << 20)

    cost = pl.CostEstimate(
        flops=2 * n * (inc_h * W + num_hidden * W * W + W * outc),
        transcendentals=n * W * (num_hidden + 1),
        bytes_accessed=4 * (n * (inc_h + outc)
                            + int(w_first.size) + int(w_rest.size)),
    )

    out = pl.pallas_call(
        partial(_occupancy_kernel, num_rest=num_rest, w_p=w_p, outc=outc),
        out_shape=jax.ShapeDtypeStruct((outc, n_pad), jnp.float32),
        grid_spec=pltpu.PrefetchScalarGridSpec(
            num_scalar_prefetch=0,
            grid=(nsteps,),
            in_specs=in_specs,
            out_specs=out_spec,
        ),
        compiler_params=pltpu.CompilerParams(
            dimension_semantics=("parallel",),
            vmem_limit_bytes=vmem_limit),
        cost_estimate=cost,
    )(xt, w_first, w_rest)

    out = out[:, :n].T                     # (n, outc)
    return out.reshape(*lead_shape, outc)


def init_params(key, *, D, W, inc, outc):
    """Deterministic synthetic init matching OccupancyMap's parameter shapes.
    Weights are kept in PyTorch layout (out_dim, in_dim)."""
    keys = jax.random.split(key, 2 * (D + 1))

    def uniform(k, shape, lo, hi):
        return jax.random.uniform(k, shape, jnp.float32, lo, hi)

    # First layer: is_first=True -> U(-1/inc, 1/inc), bias U(+-sqrt(1/inc))
    w0 = uniform(keys[0], (W, inc), -1.0 / inc, 1.0 / inc)
    b0 = uniform(keys[1], (W,), -math.sqrt(1.0 / inc), math.sqrt(1.0 / inc))

    # Hidden layers: freq_init -> U(+-sqrt(6/W)/25), bias U(+-sqrt(1/W))
    lim = math.sqrt(6.0 / W) / 25.0
    blim = math.sqrt(1.0 / W)
    wh_list, bh_list = [], []
    for i in range(D - 1):
        wh_list.append(uniform(keys[2 + 2 * i], (W, W), -lim, lim))
        bh_list.append(uniform(keys[3 + 2 * i], (W,), -blim, blim))
    if D > 1:
        wh = jnp.stack(wh_list, axis=0)
        bh = jnp.stack(bh_list, axis=0)
    else:
        wh = jnp.zeros((0, W, W), jnp.float32)
        bh = jnp.zeros((0, W), jnp.float32)

    # Sigma layer: freq_init weights, bias U(+-sqrt(1/W)), no activation
    ws = uniform(keys[-2], (outc, W), -lim, lim)
    bs = uniform(keys[-1], (outc,), -blim, blim)
    return (w0, b0, wh, bh, ws, bs)


def occupancy_map_ref(x, params):
    """Pure-JAX reference of the forward pass (PyTorch semantics)."""
    w0, b0, wh, bh, ws, bs = params
    h = jnp.sin(x @ w0.T + b0)
    for i in range(wh.shape[0]):
        h = jnp.sin(h @ wh[i].T + bh[i])
    return h @ ws.T + bs


if __name__ == "__main__":
    # Small config: D=3 layers, hidden width W=32, input channels inc=4, outc=1
    D, W, INC, OUTC = 3, 32, 4, 1
    key = jax.random.PRNGKey(0)
    k_param, k_x = jax.random.split(key)

    params = init_params(k_param, D=D, W=W, inc=INC, outc=OUTC)

    # x: batch=2, 128 sample points per batch, inc=4 features (e.g. xyz + t)
    x = jax.random.normal(k_x, (2, 128, INC), dtype=jnp.float32)

    fwd = jax.jit(occupancy_map)            # fuses the input pad+transpose
    out = fwd(x, params)
    out = jax.block_until_ready(out)

    ref = occupancy_map_ref(x, params)
    assert out.shape == (2, 128, OUTC), out.shape
    err = float(jnp.max(jnp.abs(out - ref)))
    assert jnp.allclose(out, ref, atol=1e-5, rtol=1e-5), err

    print("KERNEL_OK")
</pallas_src>

<mosaic_0001>
module attributes {stable_mosaic.version = 11 : i64} {
  func.func @_occupancy_kernel(%arg0: i32, %arg1: memref<8x128xf32, #tpu.memory_space<vmem>>, %arg2: memref<32x8xf32, #tpu.memory_space<vmem>>, %arg3: memref<96x33xf32, #tpu.memory_space<vmem>>, %arg4: memref<1x128xf32, #tpu.memory_space<vmem>>) attributes {dimension_semantics = [#tpu.dimension_semantics<parallel>], iteration_bounds = array<i64: 2>, scalar_prefetch = 0 : i64, scratch_operands = 0 : i64, tpu.core_type = #tpu.core_type<tc>, window_params = [{transform_indices = @transform_0, window_bounds = array<i64: 8, 128>}, {pipeline_mode = #tpu.pipeline_mode<synchronous>, transform_indices = @transform_1, window_bounds = array<i64: 32, 8>}, {pipeline_mode = #tpu.pipeline_mode<synchronous>, transform_indices = @transform_2, window_bounds = array<i64: 96, 33>}, {transform_indices = @transform_3, window_bounds = array<i64: 1, 128>}]} {
    %c0 = arith.constant 0 : index
    %c0_0 = arith.constant 0 : index
    %0 = vector.load %arg1[%c0, %c0_0] : memref<8x128xf32, #tpu.memory_space<vmem>>, vector<8x128xf32>
    %c0_1 = arith.constant 0 : index
    %c0_2 = arith.constant 0 : index
    %1 = vector.load %arg2[%c0_1, %c0_2] : memref<32x8xf32, #tpu.memory_space<vmem>>, vector<32x8xf32>
    %cst = arith.constant dense<0.000000e+00> : vector<32x128xf32>
    %2 = tpu.matmul %1, %0, %cst {dimension_numbers = #tpu.dot_dimension_numbers<[1], [0], [0], [1], [0, 0, 1, 1], [], []>} : vector<32x8xf32>, vector<8x128xf32>, vector<32x128xf32> -> vector<32x128xf32>
    %3 = math.sin %2 : vector<32x128xf32>
    %c0_3 = arith.constant 0 : index
    %c0_4 = arith.constant 0 : index
    %4 = vector.load %arg3[%c0_3, %c0_4] : memref<96x33xf32, #tpu.memory_space<vmem>>, vector<96x33xf32>
    %5 = vector.extract_strided_slice %4 {offsets = [0, 0], sizes = [32, 33], strides = [1, 1]} : vector<96x33xf32> to vector<32x33xf32>
    %6 = vector.extract_strided_slice %5 {offsets = [0, 0], sizes = [32, 32], strides = [1, 1]} : vector<32x33xf32> to vector<32x32xf32>
    %7 = vector.extract_strided_slice %5 {offsets = [0, 32], sizes = [32, 1], strides = [1, 1]} : vector<32x33xf32> to vector<32x1xf32>
    %cst_5 = arith.constant dense<0.000000e+00> : vector<32x128xf32>
    %8 = tpu.matmul %6, %3, %cst_5 {dimension_numbers = #tpu.dot_dimension_numbers<[1], [0], [0], [1], [0, 0, 1, 1], [], []>} : vector<32x32xf32>, vector<32x128xf32>, vector<32x128xf32> -> vector<32x128xf32>
    %9 = vector.broadcast %7 : vector<32x1xf32> to vector<32x128xf32>
    %10 = arith.addf %8, %9 : vector<32x128xf32>
    %11 = math.sin %10 : vector<32x128xf32>
    %12 = vector.extract_strided_slice %4 {offsets = [32, 0], sizes = [32, 33], strides = [1, 1]} : vector<96x33xf32> to vector<32x33xf32>
    %13 = vector.extract_strided_slice %12 {offsets = [0, 0], sizes = [32, 32], strides = [1, 1]} : vector<32x33xf32> to vector<32x32xf32>
    %14 = vector.extract_strided_slice %12 {offsets = [0, 32], sizes = [32, 1], strides = [1, 1]} : vector<32x33xf32> to vector<32x1xf32>
    %cst_6 = arith.constant dense<0.000000e+00> : vector<32x128xf32>
    %15 = tpu.matmul %13, %11, %cst_6 {dimension_numbers = #tpu.dot_dimension_numbers<[1], [0], [0], [1], [0, 0, 1, 1], [], []>} : vector<32x32xf32>, vector<32x128xf32>, vector<32x128xf32> -> vector<32x128xf32>
    %16 = vector.broadcast %14 : vector<32x1xf32> to vector<32x128xf32>
    %17 = arith.addf %15, %16 : vector<32x128xf32>
    %18 = math.sin %17 : vector<32x128xf32>
    %19 = vector.extract_strided_slice %4 {offsets = [64, 0], sizes = [32, 33], strides = [1, 1]} : vector<96x33xf32> to vector<32x33xf32>
    %20 = vector.extract_strided_slice %19 {offsets = [0, 0], sizes = [32, 32], strides = [1, 1]} : vector<32x33xf32> to vector<32x32xf32>
    %21 = vector.extract_strided_slice %19 {offsets = [0, 32], sizes = [32, 1], strides = [1, 1]} : vector<32x33xf32> to vector<32x1xf32>
    %cst_7 = arith.constant dense<0.000000e+00> : vector<32x128xf32>
    %22 = tpu.matmul %20, %18, %cst_7 {dimension_numbers = #tpu.dot_dimension_numbers<[1], [0], [0], [1], [0, 0, 1, 1], [], []>} : vector<32x32xf32>, vector<32x128xf32>, vector<32x128xf32> -> vector<32x128xf32>
    %23 = vector.broadcast %21 : vector<32x1xf32> to vector<32x128xf32>
    %24 = arith.addf %22, %23 : vector<32x128xf32>
    %25 = vector.extract_strided_slice %24 {offsets = [0, 0], sizes = [1, 128], strides = [1, 1]} : vector<32x128xf32> to vector<1x128xf32>
    %c0_8 = arith.constant 0 : index
    %c0_9 = arith.constant 0 : index
    %26 = vector.load %arg4[%c0_8, %c0_9] : memref<1x128xf32, #tpu.memory_space<vmem>>, vector<1x128xf32>
    tpu.vector_store %arg4[%c0_8, %c0_9], %25 {strides = array<i32>} : memref<1x128xf32, #tpu.memory_space<vmem>>, vector<1x128xf32>,
    return
  }
  func.func @transform_0(%arg0: i32) -> (i32, i32) {
    %c0_i32 = arith.constant 0 : i32
    %c0_i32_0 = arith.constant 0 : i32
    return %c0_i32, %arg0 : i32, i32
  }
  func.func @transform_1(%arg0: i32) -> (i32, i32) {
    %c0_i32 = arith.constant 0 : i32
    %c0_i32_0 = arith.constant 0 : i32
    %c0_i32_1 = arith.constant 0 : i32
    return %c0_i32, %c0_i32_0 : i32, i32
  }
  func.func @transform_2(%arg0: i32) -> (i32, i32) {
    %c0_i32 = arith.constant 0 : i32
    %c0_i32_0 = arith.constant 0 : i32
    %c0_i32_1 = arith.constant 0 : i32
    return %c0_i32, %c0_i32_0 : i32, i32
  }
  func.func @transform_3(%arg0: i32) -> (i32, i32) {
    %c0_i32 = arith.constant 0 : i32
    %c0_i32_0 = arith.constant 0 : i32
    return %c0_i32, %arg0 : i32, i32
  }
}

</mosaic_0001>

<llo_original>
// kernel: occupancy_map.1
$region0: #{occupancy_map.1}
  #allocation0 [shape = 'u32[]', space=smem, size = 0x4, offset = 0x4, fixed_abs, tag = 'smem constant byte address 0x4 - core index']
  #allocation1 [shape = 'u32[72,128]{1,0:T(1,128)}', space=vmem, size = 0x9000, scoped, tag = 'internal scratch']
  %s0 = inlined_call_operand.vmem [shape: f32[8,256], index: 0, kind: input, shape index: {}]
  %s1 = inlined_call_operand.vmem [shape: f32[32,8], index: 1, kind: input, shape index: {}]
  %s2 = inlined_call_operand.vmem [shape: f32[96,33], index: 2, kind: input, shape index: {}]
  %s3 = inlined_call_operand.hbm [shape: f32[1,256], index: 3, kind: output, shape index: {}]
  %s4 = sld [smem:[#allocation0]]
  $region45: #{occupancy_map.1} parent=0
    _
  %s6 = ssub.s32 1, %s4
  %s7 = scalar_select 0, %s6, %s4
  $region1: #{occupancy_map.1} parent=0
    #allocation2 [shape = 'u8[1024]{0}', space=vmem, size = 0x400, scoped, tag = 'output window, operand 0']
    #allocation3 [shape = 's32[2]{0}', space=sflag, size = 0x8, scoped, tag = 'scoped memory for occupancy_map.1']
    %8 = vsyncpa [#allocation3], 0
    %s9 = scalar_lea.sflag [#allocation3], 1
    %10 = vsyncpa %s9, 0
    loop: start=0, step=1, limit=4
    $region2: #{occupancy_map.1} parent=1 // loop_pre_header
      _
    $region3: #{occupancy_map.1} parent=1 // loop_header
      %s12 = sphi 0, %s16
      %p13 = scmp.ge.s32.totalorder %s12, 4
      %s22 = sphi 0, %s24
      %s25 = sphi 0, %s22
      %s26 = sphi 0, %s25
      %s42 = sphi 0, %s26
      %s46 = sphi 0, %s46
      %s48 = sphi 0, %s46
      %s49 = sphi 0, %s48
      %s63 = sphi 0, %s49
      %s67 = sphi 0, %s67
      %s69 = sphi 0, %s67
      %s70 = sphi 0, %s69
      %s84 = sphi 0, %s70
      %s90 = sphi 0, %s92
      %s93 = sphi 0, %s90
      %s94 = sphi 0, %s93
      %s110 = sphi 0, %s94
    $region4: #{occupancy_map.1} parent=1 // loop_header_branch
      %15 = sbr.rel (%p13) target = $region8
    $region5: #{occupancy_map.1} parent=1 // loop_body
      %s17 = ssub.s32 %s12, 1
      %s18 = ssub.s32 %s12, 2
      %s19 = sadd.s32 %s12, 1
      %s20 = ssub.s32 %s12, %s19
      %p21 = scmp.eq.s32.totalorder %s20, 0
      %s23 = sadd.s32 %s22, 1
      %s24 = scalar_select %p21, %s22, %s23
      %p27 = pneg %p21
      %p28 = scmp.eq.s32.totalorder %s12, 1
      %p29 = por %p27, %p28
      %p30 = scmp.ne.s32.totalorder %s22, %s25
      %p31 = scmp.eq.s32.totalorder %s12, 0
      %p32 = por %p30, %p31
      %p33 = scmp.ne.s32.totalorder %s22, %s25
      %p34 = scmp.eq.s32.totalorder %s17, 1
      %p35 = por %p33, %p34
      %p36 = scmp.ne.s32.totalorder %s25, %s26
      %p37 = scmp.eq.s32.totalorder %s17, 0
      %p38 = por %p36, %p37
      %p39 = scmp.ne.s32.totalorder %s25, %s26
      %p40 = scmp.eq.s32.totalorder %s18, 1
      %p41 = por %p39, %p40
      %p43 = scmp.ne.s32.totalorder %s26, %s42
      %p44 = scmp.eq.s32.totalorder %s18, 0
      %p45 = por %p43, %p44
      %s47 = sadd.s32 %s46, 1
      %p50 = scmp.eq.s32.totalorder %s12, 1
      %p51 = scmp.ne.s32.totalorder %s46, %s48
      %p52 = scmp.eq.s32.totalorder %s12, 0
      %p53 = por %p51, %p52
      %p54 = scmp.ne.s32.totalorder %s46, %s48
      %p55 = scmp.eq.s32.totalorder %s17, 1
      %p56 = por %p54, %p55
      %p57 = scmp.ne.s32.totalorder %s48, %s49
      %p58 = scmp.eq.s32.totalorder %s17, 0
      %p59 = por %p57, %p58
      %p60 = scmp.ne.s32.totalorder %s48, %s49
      %p61 = scmp.eq.s32.totalorder %s18, 1
      %p62 = por %p60, %p61
      %p64 = scmp.ne.s32.totalorder %s49, %s63
      %p65 = scmp.eq.s32.totalorder %s18, 0
      %p66 = por %p64, %p65
      %s68 = sadd.s32 %s67, 1
      %p71 = scmp.eq.s32.totalorder %s12, 1
      %p72 = scmp.ne.s32.totalorder %s67, %s69
      %p73 = scmp.eq.s32.totalorder %s12, 0
      %p74 = por %p72, %p73
      %p75 = scmp.ne.s32.totalorder %s67, %s69
      %p76 = scmp.eq.s32.totalorder %s17, 1
      %p77 = por %p75, %p76
      %p78 = scmp.ne.s32.totalorder %s69, %s70
      %p79 = scmp.eq.s32.totalorder %s17, 0
      %p80 = por %p78, %p79
      %p81 = scmp.ne.s32.totalorder %s69, %s70
      %p82 = scmp.eq.s32.totalorder %s18, 1
      %p83 = por %p81, %p82
      %p85 = scmp.ne.s32.totalorder %s70, %s84
      %p86 = scmp.eq.s32.totalorder %s18, 0
      %p87 = por %p85, %p86
      %s88 = ssub.s32 %s12, %s19
      %p89 = scmp.eq.s32.totalorder %s88, 0
      %s91 = sadd.s32 %s90, 1
      %s92 = scalar_select %p89, %s90, %s91
      %p95 = pneg %p89
      %p96 = scmp.eq.s32.totalorder %s12, 1
      %p97 = por %p95, %p96
      %p98 = scmp.ne.s32.totalorder %s90, %s93
      %p99 = scmp.eq.s32.totalorder %s12, 0
      %p100 = por %p98, %p99
      %p101 = scmp.ne.s32.totalorder %s90, %s93
      %p102 = scmp.eq.s32.totalorder %s17, 1
      %p103 = por %p101, %p102
      %p104 = scmp.ne.s32.totalorder %s93, %s94
      %p105 = scmp.eq.s32.totalorder %s17, 0
      %p106 = por %p104, %p105
      %p107 = scmp.ne.s32.totalorder %s93, %s94
      %p108 = scmp.eq.s32.totalorder %s18, 1
      %p109 = por %p107, %p108
      %p111 = scmp.ne.s32.totalorder %s94, %s110
      %p112 = scmp.eq.s32.totalorder %s18, 0
      %p113 = por %p111, %p112
      %p114 = scmp.le.s32.totalorder 1, %s12
      %p115 = scmp.lt.s32.totalorder %s12, 3
      %p116 = pnand %p114, %p115
      %p117 = pneg %p116
      // Predicated region
      $region9: #{occupancy_map.1} parent=5 // pred_check
        _
      $region10: #{occupancy_map.1} parent=5 // pred_check_branch
        %119 = sbr.rel (%p116) target = $region12
      $region11: #{occupancy_map.1} parent=5 // pred_region
        %s120 = ssub.s32 %s12, 1
        // Predicated region
        $region13: #{occupancy_map.1} parent=11 // pred_check
          %p121 = pneg %p59
        $region14: #{occupancy_map.1} parent=11 // pred_check_branch
          %123 = sbr.rel (%p121) target = $region16
        $region15: #{occupancy_map.1} parent=11 // pred_region
          _
        $region16: #{occupancy_map.1} parent=11 // pred_fallthru
          _
        // Predicated region
        $region17: #{occupancy_map.1} parent=11 // pred_check
          %p124 = pneg %p80
        $region18: #{occupancy_map.1} parent=11 // pred_check_branch
          %126 = sbr.rel (%p124) target = $region20
        $region19: #{occupancy_map.1} parent=11 // pred_region
          _
        $region20: #{occupancy_map.1} parent=11 // pred_fallthru
          _
      $region12: #{occupancy_map.1} parent=5 // pred_fallthru
        _
      %p127 = scmp.lt.s32.totalorder %s12, 2
      // Predicated region
      $region21: #{occupancy_map.1} parent=5 // pred_check
        %p128 = pneg %p127
      $region22: #{occupancy_map.1} parent=5 // pred_check_branch
        %130 = sbr.rel (%p128) target = $region24
      $region23: #{occupancy_map.1} parent=5 // pred_region
        // Predicated region
        $region25: #{occupancy_map.1} parent=23 // pred_check
          %p131 = pneg %p32
        $region26: #{occupancy_map.1} parent=23 // pred_check_branch
          %133 = sbr.rel (%p131) target = $region28
        $region27: #{occupancy_map.1} parent=23 // pred_region
          %p134 = scmp.lt.s32.totalorder %s12, 1
          %s135 = scalar_select %p134, %s12, 1
          %s136 = smul.addr %s135, 8
          %s137 = scalar_lea.vmem %s0, %s136
        $region28: #{occupancy_map.1} parent=23 // pred_fallthru
          _
      $region24: #{occupancy_map.1} parent=5 // pred_fallthru
        _
      %p138 = scmp.le.s32.totalorder 1, %s12
      %p139 = scmp.lt.s32.totalorder %s12, 3
      %p140 = pnand %p138, %p139
      %p141 = pneg %p140
      // Predicated region
      $region29: #{occupancy_map.1} parent=5 // pred_check
        _
      $region30: #{occupancy_map.1} parent=5 // pred_check_branch
        %143 = sbr.rel (%p140) target = $region32
      $region31: #{occupancy_map.1} parent=5 // pred_region
        %s144 = ssub.s32 %s12, 1
        %p145 = scmp.lt.s32.totalorder %s17, 1
        %s146 = scalar_select %p145, %s17, 1
        %s147 = smul.addr %s146, 8
        %s148 = scalar_lea.vmem %s0, %s147
        %p149 = pneg %p38
        %p150 = pneg %p35
        %p151 = pneg %p59
        %p152 = pneg %p56
        %p153 = pneg %p80
        %p154 = pneg %p77
        %p155 = pneg %p106
        %p156 = pneg %p103
        %s157 = sand.u32 %s93, 1
        %s158 = scalar_lea.sflag [#allocation3], %s157
        %s159 = sand.u32 %s93, 1
        %s160 = scalar_lea.vmem [#allocation2], %s159
        %p161 = scmp.lt.s32.totalorder %s17, 1
        %s162 = scalar_select %p161, %s17, 1
        %s163 = smul.addr %s162, 8
        %s164 = scalar_lea.vmem %s0, %s163
        %v165 = vld [vmem:[%s164] sm:$0xff]
        %v166 = vld [vmem:[%s1] sm:$0xff]
        %v167 = vld [vmem:[%s1 + $0x8] sm:$0xff]
        %v168 = vld [vmem:[%s1 + $0x10] sm:$0xff]
        %v169 = vld [vmem:[%s1 + $0x18] sm:$0xff]
        %vm170 = vcmask 64512
        %v172 = vsel %vm170, %v166, 0
        %v175 = vsel %vm170, %v167, 0
        %v178 = vsel %vm170, %v168, 0
        %v181 = vsel %vm170, %v169, 0
        %183 = vmatpush.msra.mxu0 0.0
        %184 = vmatpush.msra.mxu0 0.0
        %185 = vmatpush.msra.mxu0 0.0
        %186 = vmatpush.msra.mxu0 0.0
        %187 = vmatpush.msra.mxu0 0.0
        %188 = vmatpush.msra.mxu0 0.0
        %189 = vmatpush.msra.mxu0 0.0
        %190 = vmatpush.msra.mxu0 0.0
        %191 = vmatpush.msra.mxu0 0.0
        %192 = vmatpush.msra.mxu0 0.0
        %193 = vmatpush.msra.mxu0 0.0
        %194 = vmatpush.msra.mxu0 0.0
        %195 = vmatpush.msra.mxu0 0.0
        %196 = vmatpush.msra.mxu0 0.0
        %197 = vmatpush.msra.mxu0 0.0
        %198 = vmatpush.msra.mxu0 %v165
        %199 = vmatmul.f32.gmra.mxu0 %v172
        %v200 = vpop.f32.mrf.mxu0
        %v201 = vadd.f32 0.0, %v200
        %202 = vmatmul.f32.gmra.mxu0 %v175
        %v203 = vpop.f32.mrf.mxu0
        %v204 = vadd.f32 0.0, %v203
        %205 = vmatmul.f32.gmra.mxu0 %v178
        %v206 = vpop.f32.mrf.mxu0
        %v207 = vadd.f32 0.0, %v206
        %208 = vmatmul.f32.gmra.mxu0 %v181
        %v209 = vpop.f32.mrf.mxu0
        %v210 = vadd.f32 0.0, %v209
        %211 = vdwg.mxu0
        %v212 = vand.u32 2147483647, %v201
        %vm213 = vcmp.le.f32.partialorder %v212, 0.7853982
        %vm214 = vcmp.lt.s32.totalorder %v201, 0
        %v215 = vand.u32 %v201, 2139095040
        %v216 = vshrl.u32 %v215, 23
        %v217 = vsub.s32 %v216, 127
        %v218 = vand.u32 2147483647, %v201
        %v219 = vand.u32 %v218, 8388607
        %v220 = vor.u32 %v219, 8388608
        %v221 = vsub.s32 0, %v220
        %v222 = vadd.s32 %v217, 1
        %vm223 = vcmp.gt.s32.totalorder %v222, 0
        %v224 = vsel %vm223, %v222, 0
        %v225 = vshrl.u32 %v224, 5
        %v226 = vand.u32 %v224, 31
        %v227 = vsub.s32 32, %v226
        %v228 = vshrl.u32 683565275, %v227
        %v229 = vshll.u32 683565275, %v226
        %v230 = vshrl.u32 2475754826, %v227
        %v231 = vor.u32 %v229, %v230
        %v232 = vshll.u32 2475754826, %v226
        %v233 = vshrl.u32 2131351028, %v227
        %v234 = vor.u32 %v232, %v233
        %v235 = vshll.u32 2131351028, %v226
        %v236 = vshrl.u32 2102212464, %v227
        %v237 = vor.u32 %v235, %v236
        %v238 = vshll.u32 2102212464, %v226
        %v239 = vshrl.u32 920167782, %v227
        %v240 = vor.u32 %v238, %v239
        %v241 = vshll.u32 920167782, %v226
        %v242 = vshrl.u32 1326507024, %v227
        %v243 = vor.u32 %v241, %v242
        %vm244 = vcmp.lt.s32.totalorder %v225, 1
        %vm245 = vcmp.lt.s32.totalorder %v225, 2
        %vm246 = vcmp.lt.s32.totalorder %v225, 3
        %vm247 = vcmp.lt.s32.totalorder %v225, 4
        %v248 = vsel %vm244, %v228, %v231
        %v249 = vsel %vm247, %v237, 2102212464
        %v250 = vsel %vm246, %v234, %v249
        %v251 = vsel %vm245, %v248, %v250
        %v252 = vsel %vm244, %v231, %v234
        %v253 = vsel %vm247, %v240, 920167782
        %v254 = vsel %vm246, %v237, %v253
        %v255 = vsel %vm245, %v252, %v254
        %v256 = vsel %vm244, %v234, %v237
        %v257 = vsel %vm247, %v243, 1326507024
        %v258 = vsel %vm246, %v240, %v257
        %v259 = vsel %vm245, %v256, %v258
        %v260 = vshll.u32 %v220, 8
        %v261 = vand.u32 %v260, 65535
        %v262 = vshrl.u32 %v260, 16
        %v263 = vand.u32 %v259, 65535
        %v264 = vshrl.u32 %v259, 16
        %v265 = vmul.u32 %v261, %v263
        %v266 = vmul.u32 %v261, %v264
        %v267 = vmul.u32 %v262, %v263
        %v268 = vmul.u32 %v262, %v264
        %v269 = vshll.u32 %v266, 16
        %v270 = vshrl.u32 %v266, 16
        %v271 = vshll.u32 %v267, 16
        %v272 = vshrl.u32 %v267, 16
        %vm273 = vc.u32 %v265, %v269
        %v274 = vsel %vm273, 1, 0
        %v275 = vadd.s32 %v265, %v269
        %v276 = vadd.s32 %v268, %v274
        %vm277 = vc.u32 %v275, %v271
        %v278 = vsel %vm277, 1, 0
        %v279 = vadd.s32 %v275, %v271
        %v280 = vadd.s32 %v276, %v278
        %v281 = vadd.s32 %v280, %v270
        %v282 = vadd.s32 %v281, %v272
        %v283 = vand.u32 %v260, 65535
        %v284 = vshrl.u32 %v260, 16
        %v285 = vand.u32 %v255, 65535
        %v286 = vshrl.u32 %v255, 16
        %v287 = vmul.u32 %v283, %v285
        %v288 = vmul.u32 %v283, %v286
        %v289 = vmul.u32 %v284, %v285
        %v290 = vmul.u32 %v284, %v286
        %v291 = vshll.u32 %v288, 16
        %v292 = vshrl.u32 %v288, 16
        %v293 = vshll.u32 %v289, 16
        %v294 = vshrl.u32 %v289, 16
        %vm295 = vc.u32 %v287, %v291
        %v296 = vsel %vm295, 1, 0
        %v297 = vadd.s32 %v287, %v291
        %v298 = vadd.s32 %v290, %v296
        %vm299 = vc.u32 %v297, %v293
        %v300 = vsel %vm299, 1, 0
        %v301 = vadd.s32 %v297, %v293
        %v302 = vadd.s32 %v298, %v300
        %v303 = vadd.s32 %v302, %v292
        %v304 = vadd.s32 %v303, %v294
        %v305 = vmul.u32 %v260, %v251
        %v306 = vadd.s32 %v282, %v301
        %vm307 = vc.u32 %v282, %v301
        %v308 = vadd.s32 %v304, 1
        %v309 = vsel %vm307, %v308, %v304
        %v310 = vadd.s32 %v305, %v309
        %v311 = vadd.s32 %v310, 536870912
        %v312 = vshrl.u32 %v311, 30
        %v313 = vshll.u32 %v312, 30
        %v314 = vsub.s32 %v310, %v313
        %vm315 = vcmp.lt.s32.totalorder %v314, 0
        %v316 = vsub.s32 0, %v314
        %v317 = vsel %vm315, %v316, %v314
        %v318 = vclz %v317
        %v319 = vsub.s32 %v318, 2
        %vm320 = vcmp.gt.s32.totalorder 0, %v319
        %v321 = vsel %vm320, 0, %v319
        %v322 = vsub.s32 32, %v321
        %v323 = vshll.u32 %v314, %v321
        %v324 = vshrl.u32 %v306, %v322
        %v325 = vor.u32 %v323, %v324
        %v326 = vsub.s32 4294967266, %v321
        %v327 = vadd.s32 %v326, 127
        %v328 = vshll.u32 %v327, 23
        %v329 = vor.u32 4788187, %v328
        %v330 = vand.u32 2147483647, %v329
        %v332 = vcvt.s32.f32 %v325
        %v333 = vmul.f32 %v332, %v330
        %v334 = vxor.u32 %v333, 2147483648
        %v335 = vsel %vm214, %v334, %v333
        %v336 = vsub.s32 4, %v312
        %v337 = vsel %vm214, %v336, %v312
        %v338 = vsel %vm213, %v201, %v335
        %v339 = vsel %vm213, 0, %v337
        %v340 = vmul.f32 %v338, %v338
        %v341 = vmul.f32 %v340, -0.001358992
        %v342 = vadd.f32 %v341, 0.041655596
        %v343 = vmul.f32 %v340, %v342
        %v344 = vadd.f32 %v343, -0.4999988
        %v345 = vmul.f32 %v340, %v344
        %v346 = vadd.f32 1.0, %v345
        %v347 = vmul.f32 %v338, %v338
        %v348 = vmul.f32 %v347, -0.00019511016
        %v349 = vadd.f32 %v348, 0.008332121
        %v350 = vmul.f32 %v347, %v349
        %v351 = vadd.f32 %v350, -0.16666654
        %v352 = vmul.f32 %v347, %v351
        %v353 = vadd.f32 %v352, 1.0
        %v354 = vmul.f32 %v353, %v338
        %vm355 = vweird.f32 %v201
        %v356 = vadd.s32 %v339, 3
        %v357 = vand.u32 %v356, 3
        %vm358 = vcmp.lt.s32.totalorder %v357, 2
        %vm359 = vcmp.eq.s32.totalorder %v357, 0
        %v360 = vxor.u32 %v354, 2147483648
        %v361 = vsel %vm359, %v346, %v360
        %vm362 = vcmp.eq.s32.totalorder %v357, 2
        %v363 = vxor.u32 %v346, 2147483648
        %v364 = vsel %vm362, %v363, %v354
        %v365 = vsel %vm358, %v361, %v364
        %v366 = vsel %vm355, nan, %v365
        %v367 = vand.u32 2147483647, %v204
        %vm368 = vcmp.le.f32.partialorder %v367, 0.7853982
        %vm369 = vcmp.lt.s32.totalorder %v204, 0
        %v370 = vand.u32 %v204, 2139095040
        %v371 = vshrl.u32 %v370, 23
        %v372 = vsub.s32 %v371, 127
        %v373 = vand.u32 2147483647, %v204
        %v374 = vand.u32 %v373, 8388607
        %v375 = vor.u32 %v374, 8388608
        %v376 = vsub.s32 0, %v375
        %v377 = vadd.s32 %v372, 1
        %vm378 = vcmp.gt.s32.totalorder %v377, 0
        %v379 = vsel %vm378, %v377, 0
        %v380 = vshrl.u32 %v379, 5
        %v381 = vand.u32 %v379, 31
        %v382 = vsub.s32 32, %v381
        %v383 = vshrl.u32 683565275, %v382
        %v384 = vshll.u32 683565275, %v381
        %v385 = vshrl.u32 2475754826, %v382
        %v386 = vor.u32 %v384, %v385
        %v387 = vshll.u32 2475754826, %v381
        %v388 = vshrl.u32 2131351028, %v382
        %v389 = vor.u32 %v387, %v388
        %v390 = vshll.u32 2131351028, %v381
        %v391 = vshrl.u32 2102212464, %v382
        %v392 = vor.u32 %v390, %v391
        %v393 = vshll.u32 2102212464, %v381
        %v394 = vshrl.u32 920167782, %v382
        %v395 = vor.u32 %v393, %v394
        %v396 = vshll.u32 920167782, %v381
        %v397 = vshrl.u32 1326507024, %v382
        %v398 = vor.u32 %v396, %v397
        %vm399 = vcmp.lt.s32.totalorder %v380, 1
        %vm400 = vcmp.lt.s32.totalorder %v380, 2
        %vm401 = vcmp.lt.s32.totalorder %v380, 3
        %vm402 = vcmp.lt.s32.totalorder %v380, 4
        %v403 = vsel %vm399, %v383, %v386
        %v404 = vsel %vm402, %v392, 2102212464
        %v405 = vsel %vm401, %v389, %v404
        %v406 = vsel %vm400, %v403, %v405
        %v407 = vsel %vm399, %v386, %v389
        %v408 = vsel %vm402, %v395, 920167782
        %v409 = vsel %vm401, %v392, %v408
        %v410 = vsel %vm400, %v407, %v409
        %v411 = vsel %vm399, %v389, %v392
        %v412 = vsel %vm402, %v398, 1326507024
        %v413 = vsel %vm401, %v395, %v412
        %v414 = vsel %vm400, %v411, %v413
        %v415 = vshll.u32 %v375, 8
        %v416 = vand.u32 %v415, 65535
        %v417 = vshrl.u32 %v415, 16
        %v418 = vand.u32 %v414, 65535
        %v419 = vshrl.u32 %v414, 16
        %v420 = vmul.u32 %v416, %v418
        %v421 = vmul.u32 %v416, %v419
        %v422 = vmul.u32 %v417, %v418
        %v423 = vmul.u32 %v417, %v419
        %v424 = vshll.u32 %v421, 16
        %v425 = vshrl.u32 %v421, 16
        %v426 = vshll.u32 %v422, 16
        %v427 = vshrl.u32 %v422, 16
        %vm428 = vc.u32 %v420, %v424
        %v429 = vsel %vm428, 1, 0
        %v430 = vadd.s32 %v420, %v424
        %v431 = vadd.s32 %v423, %v429
        %vm432 = vc.u32 %v430, %v426
        %v433 = vsel %vm432, 1, 0
        %v434 = vadd.s32 %v430, %v426
        %v435 = vadd.s32 %v431, %v433
        %v436 = vadd.s32 %v435, %v425
        %v437 = vadd.s32 %v436, %v427
        %v438 = vand.u32 %v415, 65535
        %v439 = vshrl.u32 %v415, 16
        %v440 = vand.u32 %v410, 65535
        %v441 = vshrl.u32 %v410, 16
        %v442 = vmul.u32 %v438, %v440
        %v443 = vmul.u32 %v438, %v441
        %v444 = vmul.u32 %v439, %v440
        %v445 = vmul.u32 %v439, %v441
        %v446 = vshll.u32 %v443, 16
        %v447 = vshrl.u32 %v443, 16
        %v448 = vshll.u32 %v444, 16
        %v449 = vshrl.u32 %v444, 16
        %vm450 = vc.u32 %v442, %v446
        %v451 = vsel %vm450, 1, 0
        %v452 = vadd.s32 %v442, %v446
        %v453 = vadd.s32 %v445, %v451
        %vm454 = vc.u32 %v452, %v448
        %v455 = vsel %vm454, 1, 0
        %v456 = vadd.s32 %v452, %v448
        %v457 = vadd.s32 %v453, %v455
        %v458 = vadd.s32 %v457, %v447
        %v459 = vadd.s32 %v458, %v449
        %v460 = vmul.u32 %v415, %v406
        %v461 = vadd.s32 %v437, %v456
        %vm462 = vc.u32 %v437, %v456
        %v463 = vadd.s32 %v459, 1
        %v464 = vsel %vm462, %v463, %v459
        %v465 = vadd.s32 %v460, %v464
        %v466 = vadd.s32 %v465, 536870912
        %v467 = vshrl.u32 %v466, 30
        %v468 = vshll.u32 %v467, 30
        %v469 = vsub.s32 %v465, %v468
        %vm470 = vcmp.lt.s32.totalorder %v469, 0
        %v471 = vsub.s32 0, %v469
        %v472 = vsel %vm470, %v471, %v469
        %v473 = vclz %v472
        %v474 = vsub.s32 %v473, 2
        %vm475 = vcmp.gt.s32.totalorder 0, %v474
        %v476 = vsel %vm475, 0, %v474
        %v477 = vsub.s32 32, %v476
        %v478 = vshll.u32 %v469, %v476
        %v479 = vshrl.u32 %v461, %v477
        %v480 = vor.u32 %v478, %v479
        %v481 = vsub.s32 4294967266, %v476
        %v482 = vadd.s32 %v481, 127
        %v483 = vshll.u32 %v482, 23
        %v484 = vor.u32 4788187, %v483
        %v485 = vand.u32 2147483647, %v484
        %v487 = vcvt.s32.f32 %v480
        %v488 = vmul.f32 %v487, %v485
        %v489 = vxor.u32 %v488, 2147483648
        %v490 = vsel %vm369, %v489, %v488
        %v491 = vsub.s32 4, %v467
        %v492 = vsel %vm369, %v491, %v467
        %v493 = vsel %vm368, %v204, %v490
        %v494 = vsel %vm368, 0, %v492
        %v495 = vmul.f32 %v493, %v493
        %v496 = vmul.f32 %v495, -0.001358992
        %v497 = vadd.f32 %v496, 0.041655596
        %v498 = vmul.f32 %v495, %v497
        %v499 = vadd.f32 %v498, -0.4999988
        %v500 = vmul.f32 %v495, %v499
        %v501 = vadd.f32 1.0, %v500
        %v502 = vmul.f32 %v493, %v493
        %v503 = vmul.f32 %v502, -0.00019511016
        %v504 = vadd.f32 %v503, 0.008332121
        %v505 = vmul.f32 %v502, %v504
        %v506 = vadd.f32 %v505, -0.16666654
        %v507 = vmul.f32 %v502, %v506
        %v508 = vadd.f32 %v507, 1.0
        %v509 = vmul.f32 %v508, %v493
        %vm510 = vweird.f32 %v204
        %v511 = vadd.s32 %v494, 3
        %v512 = vand.u32 %v511, 3
        %vm513 = vcmp.lt.s32.totalorder %v512, 2
        %vm514 = vcmp.eq.s32.totalorder %v512, 0
        %v515 = vxor.u32 %v509, 2147483648
        %v516 = vsel %vm514, %v501, %v515
        %vm517 = vcmp.eq.s32.totalorder %v512, 2
        %v518 = vxor.u32 %v501, 2147483648
        %v519 = vsel %vm517, %v518, %v509
        %v520 = vsel %vm513, %v516, %v519
        %v521 = vsel %vm510, nan, %v520
        %v522 = vand.u32 2147483647, %v207
        %vm523 = vcmp.le.f32.partialorder %v522, 0.7853982
        %vm524 = vcmp.lt.s32.totalorder %v207, 0
        %v525 = vand.u32 %v207, 2139095040
        %v526 = vshrl.u32 %v525, 23
        %v527 = vsub.s32 %v526, 127
        %v528 = vand.u32 2147483647, %v207
        %v529 = vand.u32 %v528, 8388607
        %v530 = vor.u32 %v529, 8388608
        %v531 = vsub.s32 0, %v530
        %v532 = vadd.s32 %v527, 1
        %vm533 = vcmp.gt.s32.totalorder %v532, 0
        %v534 = vsel %vm533, %v532, 0
        %v535 = vshrl.u32 %v534, 5
        %v536 = vand.u32 %v534, 31
        %v537 = vsub.s32 32, %v536
        %v538 = vshrl.u32 683565275, %v537
        %v539 = vshll.u32 683565275, %v536
        %v540 = vshrl.u32 2475754826, %v537
        %v541 = vor.u32 %v539, %v540
        %v542 = vshll.u32 2475754826, %v536
        %v543 = vshrl.u32 2131351028, %v537
        %v544 = vor.u32 %v542, %v543
        %v545 = vshll.u32 2131351028, %v536
        %v546 = vshrl.u32 2102212464, %v537
        %v547 = vor.u32 %v545, %v546
        %v548 = vshll.u32 2102212464, %v536
        %v549 = vshrl.u32 920167782, %v537
        %v550 = vor.u32 %v548, %v549
        %v551 = vshll.u32 920167782, %v536
        %v552 = vshrl.u32 1326507024, %v537
        %v553 = vor.u32 %v551, %v552
        %vm554 = vcmp.lt.s32.totalorder %v535, 1
        %vm555 = vcmp.lt.s32.totalorder %v535, 2
        %vm556 = vcmp.lt.s32.totalorder %v535, 3
        %vm557 = vcmp.lt.s32.totalorder %v535, 4
        %v558 = vsel %vm554, %v538, %v541
        %v559 = vsel %vm557, %v547, 2102212464
        %v560 = vsel %vm556, %v544, %v559
        %v561 = vsel %vm555, %v558, %v560
        %v562 = vsel %vm554, %v541, %v544
        %v563 = vsel %vm557, %v550, 920167782
        %v564 = vsel %vm556, %v547, %v563
        %v565 = vsel %vm555, %v562, %v564
        %v566 = vsel %vm554, %v544, %v547
        %v567 = vsel %vm557, %v553, 1326507024
        %v568 = vsel %vm556, %v550, %v567
        %v569 = vsel %vm555, %v566, %v568
        %v570 = vshll.u32 %v530, 8
        %v571 = vand.u32 %v570, 65535
        %v572 = vshrl.u32 %v570, 16
        %v573 = vand.u32 %v569, 65535
        %v574 = vshrl.u32 %v569, 16
        %v575 = vmul.u32 %v571, %v573
        %v576 = vmul.u32 %v571, %v574
        %v577 = vmul.u32 %v572, %v573
        %v578 = vmul.u32 %v572, %v574
        %v579 = vshll.u32 %v576, 16
        %v580 = vshrl.u32 %v576, 16
        %v581 = vshll.u32 %v577, 16
        %v582 = vshrl.u32 %v577, 16
        %vm583 = vc.u32 %v575, %v579
        %v584 = vsel %vm583, 1, 0
        %v585 = vadd.s32 %v575, %v579
        %v586 = vadd.s32 %v578, %v584
        %vm587 = vc.u32 %v585, %v581
        %v588 = vsel %vm587, 1, 0
        %v589 = vadd.s32 %v585, %v581
        %v590 = vadd.s32 %v586, %v588
        %v591 = vadd.s32 %v590, %v580
        %v592 = vadd.s32 %v591, %v582
        %v593 = vand.u32 %v570, 65535
        %v594 = vshrl.u32 %v570, 16
        %v595 = vand.u32 %v565, 65535
        %v596 = vshrl.u32 %v565, 16
        %v597 = vmul.u32 %v593, %v595
        %v598 = vmul.u32 %v593, %v596
        %v599 = vmul.u32 %v594, %v595
        %v600 = vmul.u32 %v594, %v596
        %v601 = vshll.u32 %v598, 16
        %v602 = vshrl.u32 %v598, 16
        %v603 = vshll.u32 %v599, 16
        %v604 = vshrl.u32 %v599, 16
        %vm605 = vc.u32 %v597, %v601
        %v606 = vsel %vm605, 1, 0
        %v607 = vadd.s32 %v597, %v601
        %v608 = vadd.s32 %v600, %v606
        %vm609 = vc.u32 %v607, %v603
        %v610 = vsel %vm609, 1, 0
        %v611 = vadd.s32 %v607, %v603
        %v612 = vadd.s32 %v608, %v610
        %v613 = vadd.s32 %v612, %v602
        %v614 = vadd.s32 %v613, %v604
        %v615 = vmul.u32 %v570, %v561
        %v616 = vadd.s32 %v592, %v611
        %vm617 = vc.u32 %v592, %v611
        %v618 = vadd.s32 %v614, 1
        %v619 = vsel %vm617, %v618, %v614
        %v620 = vadd.s32 %v615, %v619
        %v621 = vadd.s32 %v620, 536870912
        %v622 = vshrl.u32 %v621, 30
        %v623 = vshll.u32 %v622, 30
        %v624 = vsub.s32 %v620, %v623
        %vm625 = vcmp.lt.s32.totalorder %v624, 0
        %v626 = vsub.s32 0, %v624
        %v627 = vsel %vm625, %v626, %v624
        %v628 = vclz %v627
        %v629 = vsub.s32 %v628, 2
        %vm630 = vcmp.gt.s32.totalorder 0, %v629
        %v631 = vsel %vm630, 0, %v629
        %v632 = vsub.s32 32, %v631
        %v633 = vshll.u32 %v624, %v631
        %v634 = vshrl.u32 %v616, %v632
        %v635 = vor.u32 %v633, %v634
        %v636 = vsub.s32 4294967266, %v631
        %v637 = vadd.s32 %v636, 127
        %v638 = vshll.u32 %v637, 23
        %v639 = vor.u32 4788187, %v638
        %v640 = vand.u32 2147483647, %v639
        %v642 = vcvt.s32.f32 %v635
        %v643 = vmul.f32 %v642, %v640
        %v644 = vxor.u32 %v643, 2147483648
        %v645 = vsel %vm524, %v644, %v643
        %v646 = vsub.s32 4, %v622
        %v647 = vsel %vm524, %v646, %v622
        %v648 = vsel %vm523, %v207, %v645
        %v649 = vsel %vm523, 0, %v647
        %v650 = vmul.f32 %v648, %v648
        %v651 = vmul.f32 %v650, -0.001358992
        %v652 = vadd.f32 %v651, 0.041655596
        %v653 = vmul.f32 %v650, %v652
        %v654 = vadd.f32 %v653, -0.4999988
        %v655 = vmul.f32 %v650, %v654
        %v656 = vadd.f32 1.0, %v655
        %v657 = vmul.f32 %v648, %v648
        %v658 = vmul.f32 %v657, -0.00019511016
        %v659 = vadd.f32 %v658, 0.008332121
        %v660 = vmul.f32 %v657, %v659
        %v661 = vadd.f32 %v660, -0.16666654
        %v662 = vmul.f32 %v657, %v661
        %v663 = vadd.f32 %v662, 1.0
        %v664 = vmul.f32 %v663, %v648
        %vm665 = vweird.f32 %v207
        %v666 = vadd.s32 %v649, 3
        %v667 = vand.u32 %v666, 3
        %vm668 = vcmp.lt.s32.totalorder %v667, 2
        %vm669 = vcmp.eq.s32.totalorder %v667, 0
        %v670 = vxor.u32 %v664, 2147483648
        %v671 = vsel %vm669, %v656, %v670
        %vm672 = vcmp.eq.s32.totalorder %v667, 2
        %v673 = vxor.u32 %v656, 2147483648
        %v674 = vsel %vm672, %v673, %v664
        %v675 = vsel %vm668, %v671, %v674
        %v676 = vsel %vm665, nan, %v675
        %v677 = vand.u32 2147483647, %v210
        %vm678 = vcmp.le.f32.partialorder %v677, 0.7853982
        %vm679 = vcmp.lt.s32.totalorder %v210, 0
        %v680 = vand.u32 %v210, 2139095040
        %v681 = vshrl.u32 %v680, 23
        %v682 = vsub.s32 %v681, 127
        %v683 = vand.u32 2147483647, %v210
        %v684 = vand.u32 %v683, 8388607
        %v685 = vor.u32 %v684, 8388608
        %v686 = vsub.s32 0, %v685
        %v687 = vadd.s32 %v682, 1
        %vm688 = vcmp.gt.s32.totalorder %v687, 0
        %v689 = vsel %vm688, %v687, 0
        %v690 = vshrl.u32 %v689, 5
        %v691 = vand.u32 %v689, 31
        %v692 = vsub.s32 32, %v691
        %v693 = vshrl.u32 683565275, %v692
        %v694 = vshll.u32 683565275, %v691
        %v695 = vshrl.u32 2475754826, %v692
        %v696 = vor.u32 %v694, %v695
        %v697 = vshll.u32 2475754826, %v691
        %v698 = vshrl.u32 2131351028, %v692
        %v699 = vor.u32 %v697, %v698
        %v700 = vshll.u32 2131351028, %v691
        %v701 = vshrl.u32 2102212464, %v692
        %v702 = vor.u32 %v700, %v701
        %v703 = vshll.u32 2102212464, %v691
        %v704 = vshrl.u32 920167782, %v692
        %v705 = vor.u32 %v703, %v704
        %v706 = vshll.u32 920167782, %v691
        %v707 = vshrl.u32 1326507024, %v692
        %v708 = vor.u32 %v706, %v707
        %vm709 = vcmp.lt.s32.totalorder %v690, 1
        %vm710 = vcmp.lt.s32.totalorder %v690, 2
        %vm711 = vcmp.lt.s32.totalorder %v690, 3
        %vm712 = vcmp.lt.s32.totalorder %v690, 4
        %v713 = vsel %vm709, %v693, %v696
        %v714 = vsel %vm712, %v702, 2102212464
        %v715 = vsel %vm711, %v699, %v714
        %v716 = vsel %vm710, %v713, %v715
        %v717 = vsel %vm709, %v696, %v699
        %v718 = vsel %vm712, %v705, 920167782
        %v719 = vsel %vm711, %v702, %v718
        %v720 = vsel %vm710, %v717, %v719
        %v721 = vsel %vm709, %v699, %v702
        %v722 = vsel %vm712, %v708, 1326507024
        %v723 = vsel %vm711, %v705, %v722
        %v724 = vsel %vm710, %v721, %v723
        %v725 = vshll.u32 %v685, 8
        %v726 = vand.u32 %v725, 65535
        %v727 = vshrl.u32 %v725, 16
        %v728 = vand.u32 %v724, 65535
        %v729 = vshrl.u32 %v724, 16
        %v730 = vmul.u32 %v726, %v728
        %v731 = vmul.u32 %v726, %v729
        %v732 = vmul.u32 %v727, %v728
        %v733 = vmul.u32 %v727, %v729
        %v734 = vshll.u32 %v731, 16
        %v735 = vshrl.u32 %v731, 16
        %v736 = vshll.u32 %v732, 16
        %v737 = vshrl.u32 %v732, 16
        %vm738 = vc.u32 %v730, %v734
        %v739 = vsel %vm738, 1, 0
        %v740 = vadd.s32 %v730, %v734
        %v741 = vadd.s32 %v733, %v739
        %vm742 = vc.u32 %v740, %v736
        %v743 = vsel %vm742, 1, 0
        %v744 = vadd.s32 %v740, %v736
        %v745 = vadd.s32 %v741, %v743
        %v746 = vadd.s32 %v745, %v735
        %v747 = vadd.s32 %v746, %v737
        %v748 = vand.u32 %v725, 65535
        %v749 = vshrl.u32 %v725, 16
        %v750 = vand.u32 %v720, 65535
        %v751 = vshrl.u32 %v720, 16
        %v752 = vmul.u32 %v748, %v750
        %v753 = vmul.u32 %v748, %v751
        %v754 = vmul.u32 %v749, %v750
        %v755 = vmul.u32 %v749, %v751
        %v756 = vshll.u32 %v753, 16
        %v757 = vshrl.u32 %v753, 16
        %v758 = vshll.u32 %v754, 16
        %v759 = vshrl.u32 %v754, 16
        %vm760 = vc.u32 %v752, %v756
        %v761 = vsel %vm760, 1, 0
        %v762 = vadd.s32 %v752, %v756
        %v763 = vadd.s32 %v755, %v761
        %vm764 = vc.u32 %v762, %v758
        %v765 = vsel %vm764, 1, 0
        %v766 = vadd.s32 %v762, %v758
        %v767 = vadd.s32 %v763, %v765
        %v768 = vadd.s32 %v767, %v757
        %v769 = vadd.s32 %v768, %v759
        %v770 = vmul.u32 %v725, %v716
        %v771 = vadd.s32 %v747, %v766
        %vm772 = vc.u32 %v747, %v766
        %v773 = vadd.s32 %v769, 1
        %v774 = vsel %vm772, %v773, %v769
        %v775 = vadd.s32 %v770, %v774
        %v776 = vadd.s32 %v775, 536870912
        %v777 = vshrl.u32 %v776, 30
        %v778 = vshll.u32 %v777, 30
        %v779 = vsub.s32 %v775, %v778
        %vm780 = vcmp.lt.s32.totalorder %v779, 0
        %v781 = vsub.s32 0, %v779
        %v782 = vsel %vm780, %v781, %v779
        %v783 = vclz %v782
        %v784 = vsub.s32 %v783, 2
        %vm785 = vcmp.gt.s32.totalorder 0, %v784
        %v786 = vsel %vm785, 0, %v784
        %v787 = vsub.s32 32, %v786
        %v788 = vshll.u32 %v779, %v786
        %v789 = vshrl.u32 %v771, %v787
        %v790 = vor.u32 %v788, %v789
        %v791 = vsub.s32 4294967266, %v786
        %v792 = vadd.s32 %v791, 127
        %v793 = vshll.u32 %v792, 23
        %v794 = vor.u32 4788187, %v793
        %v795 = vand.u32 2147483647, %v794
        %v797 = vcvt.s32.f32 %v790
        %v798 = vmul.f32 %v797, %v795
        %v799 = vxor.u32 %v798, 2147483648
        %v800 = vsel %vm679, %v799, %v798
        %v801 = vsub.s32 4, %v777
        %v802 = vsel %vm679, %v801, %v777
        %v803 = vsel %vm678, %v210, %v800
        %v804 = vsel %vm678, 0, %v802
        %v805 = vmul.f32 %v803, %v803
        %v806 = vmul.f32 %v805, -0.001358992
        %v807 = vadd.f32 %v806, 0.041655596
        %v808 = vmul.f32 %v805, %v807
        %v809 = vadd.f32 %v808, -0.4999988
        %v810 = vmul.f32 %v805, %v809
        %v811 = vadd.f32 1.0, %v810
        %v812 = vmul.f32 %v803, %v803
        %v813 = vmul.f32 %v812, -0.00019511016
        %v814 = vadd.f32 %v813, 0.008332121
        %v815 = vmul.f32 %v812, %v814
        %v816 = vadd.f32 %v815, -0.16666654
        %v817 = vmul.f32 %v812, %v816
        %v818 = vadd.f32 %v817, 1.0
        %v819 = vmul.f32 %v818, %v803
        %vm820 = vweird.f32 %v210
        %v821 = vadd.s32 %v804, 3
        %v822 = vand.u32 %v821, 3
        %vm823 = vcmp.lt.s32.totalorder %v822, 2
        %vm824 = vcmp.eq.s32.totalorder %v822, 0
        %v825 = vxor.u32 %v819, 2147483648
        %v826 = vsel %vm824, %v811, %v825
        %vm827 = vcmp.eq.s32.totalorder %v822, 2
        %v828 = vxor.u32 %v811, 2147483648
        %v829 = vsel %vm827, %v828, %v819
        %v830 = vsel %vm823, %v826, %v829
        %v831 = vsel %vm820, nan, %v830
        %v832 = vld [vmem:[%s2] sm:$0xff]
        %v833 = vld [vmem:[%s2 + $0x8] sm:$0xff]
        %v834 = vld [vmem:[%s2 + $0x10] sm:$0xff]
        %v835 = vld [vmem:[%s2 + $0x18] sm:$0xff]
        %v836 = vld [vmem:[%s2 + $0x20] sm:$0xff]
        %v837 = vld [vmem:[%s2 + $0x28] sm:$0xff]
        %v838 = vld [vmem:[%s2 + $0x30] sm:$0xff]
        %v839 = vld [vmem:[%s2 + $0x38] sm:$0xff]
        %v840 = vld [vmem:[%s2 + $0x40] sm:$0xff]
        %v841 = vld [vmem:[%s2 + $0x48] sm:$0xff]
        %v842 = vld [vmem:[%s2 + $0x50] sm:$0xff]
        %v843 = vld [vmem:[%s2 + $0x58] sm:$0xff]
        %845 = vset.pattern.permute.xlu0 32
        %846 = vperm.xlu0 %845, %v832
        %v847 = vpop.permute.xlu0 %846
        %850 = vset.pattern.permute.xlu0 32
        %851 = vperm.xlu0 %850, %v833
        %v852 = vpop.permute.xlu0 %851
        %855 = vset.pattern.permute.xlu0 32
        %856 = vperm.xlu0 %855, %v834
        %v857 = vpop.permute.xlu0 %856
        %860 = vset.pattern.permute.xlu0 32
        %861 = vperm.xlu0 %860, %v835
        %v862 = vpop.permute.xlu0 %861
        %vm864 = vcmask 261120
        %v865 = vsel %vm864, %v832, 0
        %v867 = vsel %vm864, %v833, 0
        %v869 = vsel %vm864, %v834, 0
        %v871 = vsel %vm864, %v835, 0
        %873 = vmatpush.msra.mxu0 0.0
        %874 = vmatpush.msra.mxu0 0.0
        %875 = vmatpush.msra.mxu0 0.0
        %876 = vmatpush.msra.mxu0 0.0
        %877 = vmatpush.msra.mxu0 0.0
        %878 = vmatpush.msra.mxu0 0.0
        %879 = vmatpush.msra.mxu0 0.0
        %880 = vmatpush.msra.mxu0 0.0
        %881 = vmatpush.msra.mxu0 0.0
        %882 = vmatpush.msra.mxu0 0.0
        %883 = vmatpush.msra.mxu0 0.0
        %884 = vmatpush.msra.mxu0 0.0
        %885 = vmatpush.msra.mxu0 %v831
        %886 = vmatpush.msra.mxu0 %v676
        %887 = vmatpush.msra.mxu0 %v521
        %888 = vmatpush.msra.mxu0 %v366
        %889 = vmatmul.f32.gmra.mxu0 %v865
        %v890 = vpop.f32.mrf.mxu0
        %v891 = vadd.f32 %v847, %v890
        %892 = vmatmul.f32.gmra.mxu0 %v867
        %v893 = vpop.f32.mrf.mxu0
        %v894 = vadd.f32 %v852, %v893
        %895 = vmatmul.f32.gmra.mxu0 %v869
        %v896 = vpop.f32.mrf.mxu0
        %v897 = vadd.f32 %v857, %v896
        %898 = vmatmul.f32.gmra.mxu0 %v871
        %v899 = vpop.f32.mrf.mxu0
        %v900 = vadd.f32 %v862, %v899
        %901 = vdwg.mxu0
        %v902 = vand.u32 2147483647, %v891
        %vm903 = vcmp.le.f32.partialorder %v902, 0.7853982
        %vm904 = vcmp.lt.s32.totalorder %v891, 0
        %v905 = vand.u32 %v891, 2139095040
        %v906 = vshrl.u32 %v905, 23
        %v907 = vsub.s32 %v906, 127
        %v908 = vand.u32 2147483647, %v891
        %v909 = vand.u32 %v908, 8388607
        %v910 = vor.u32 %v909, 8388608
        %v911 = vsub.s32 0, %v910
        %v912 = vadd.s32 %v907, 1
        %vm913 = vcmp.gt.s32.totalorder %v912, 0
        %v914 = vsel %vm913, %v912, 0
        %v915 = vshrl.u32 %v914, 5
        %v916 = vand.u32 %v914, 31
        %v917 = vsub.s32 32, %v916
        %v918 = vshrl.u32 683565275, %v917
        %v919 = vshll.u32 683565275, %v916
        %v920 = vshrl.u32 2475754826, %v917
        %v921 = vor.u32 %v919, %v920
        %v922 = vshll.u32 2475754826, %v916
        %v923 = vshrl.u32 2131351028, %v917
        %v924 = vor.u32 %v922, %v923
        %v925 = vshll.u32 2131351028, %v916
        %v926 = vshrl.u32 2102212464, %v917
        %v927 = vor.u32 %v925, %v926
        %v928 = vshll.u32 2102212464, %v916
        %v929 = vshrl.u32 920167782, %v917
        %v930 = vor.u32 %v928, %v929
        %v931 = vshll.u32 920167782, %v916
        %v932 = vshrl.u32 1326507024, %v917
        %v933 = vor.u32 %v931, %v932
        %vm934 = vcmp.lt.s32.totalorder %v915, 1
        %vm935 = vcmp.lt.s32.totalorder %v915, 2
        %vm936 = vcmp.lt.s32.totalorder %v915, 3
        %vm937 = vcmp.lt.s32.totalorder %v915, 4
        %v938 = vsel %vm934, %v918, %v921
        %v939 = vsel %vm937, %v927, 2102212464
        %v940 = vsel %vm936, %v924, %v939
        %v941 = vsel %vm935, %v938, %v940
        %v942 = vsel %vm934, %v921, %v924
        %v943 = vsel %vm937, %v930, 920167782
        %v944 = vsel %vm936, %v927, %v943
        %v945 = vsel %vm935, %v942, %v944
        %v946 = vsel %vm934, %v924, %v927
        %v947 = vsel %vm937, %v933, 1326507024
        %v948 = vsel %vm936, %v930, %v947
        %v949 = vsel %vm935, %v946, %v948
        %v950 = vshll.u32 %v910, 8
        %v951 = vand.u32 %v950, 65535
        %v952 = vshrl.u32 %v950, 16
        %v953 = vand.u32 %v949, 65535
        %v954 = vshrl.u32 %v949, 16
        %v955 = vmul.u32 %v951, %v953
        %v956 = vmul.u32 %v951, %v954
        %v957 = vmul.u32 %v952, %v953
        %v958 = vmul.u32 %v952, %v954
        %v959 = vshll.u32 %v956, 16
        %v960 = vshrl.u32 %v956, 16
        %v961 = vshll.u32 %v957, 16
        %v962 = vshrl.u32 %v957, 16
        %vm963 = vc.u32 %v955, %v959
        %v964 = vsel %vm963, 1, 0
        %v965 = vadd.s32 %v955, %v959
        %v966 = vadd.s32 %v958, %v964
        %vm967 = vc.u32 %v965, %v961
        %v968 = vsel %vm967, 1, 0
        %v969 = vadd.s32 %v965, %v961
        %v970 = vadd.s32 %v966, %v968
        %v971 = vadd.s32 %v970, %v960
        %v972 = vadd.s32 %v971, %v962
        %v973 = vand.u32 %v950, 65535
        %v974 = vshrl.u32 %v950, 16
        %v975 = vand.u32 %v945, 65535
        %v976 = vshrl.u32 %v945, 16
        %v977 = vmul.u32 %v973, %v975
        %v978 = vmul.u32 %v973, %v976
        %v979 = vmul.u32 %v974, %v975
        %v980 = vmul.u32 %v974, %v976
        %v981 = vshll.u32 %v978, 16
        %v982 = vshrl.u32 %v978, 16
        %v983 = vshll.u32 %v979, 16
        %v984 = vshrl.u32 %v979, 16
        %vm985 = vc.u32 %v977, %v981
        %v986 = vsel %vm985, 1, 0
        %v987 = vadd.s32 %v977, %v981
        %v988 = vadd.s32 %v980, %v986
        %vm989 = vc.u32 %v987, %v983
        %v990 = vsel %vm989, 1, 0
        %v991 = vadd.s32 %v987, %v983
        %v992 = vadd.s32 %v988, %v990
        %v993 = vadd.s32 %v992, %v982
        %v994 = vadd.s32 %v993, %v984
        %v995 = vmul.u32 %v950, %v941
        %v996 = vadd.s32 %v972, %v991
        %vm997 = vc.u32 %v972, %v991
        %v998 = vadd.s32 %v994, 1
        %v999 = vsel %vm997, %v998, %v994
        %v1000 = vadd.s32 %v995, %v999
        %v1001 = vadd.s32 %v1000, 536870912
        %v1002 = vshrl.u32 %v1001, 30
        %v1003 = vshll.u32 %v1002, 30
        %v1004 = vsub.s32 %v1000, %v1003
        %vm1005 = vcmp.lt.s32.totalorder %v1004, 0
        %v1006 = vsub.s32 0, %v1004
        %v1007 = vsel %vm1005, %v1006, %v1004
        %v1008 = vclz %v1007
        %v1009 = vsub.s32 %v1008, 2
        %vm1010 = vcmp.gt.s32.totalorder 0, %v1009
        %v1011 = vsel %vm1010, 0, %v1009
        %v1012 = vsub.s32 32, %v1011
        %v1013 = vshll.u32 %v1004, %v1011
        %v1014 = vshrl.u32 %v996, %v1012
        %v1015 = vor.u32 %v1013, %v1014
        %v1016 = vsub.s32 4294967266, %v1011
        %v1017 = vadd.s32 %v1016, 127
        %v1018 = vshll.u32 %v1017, 23
        %v1019 = vor.u32 4788187, %v1018
        %v1020 = vand.u32 2147483647, %v1019
        %v1022 = vcvt.s32.f32 %v1015
        %v1023 = vmul.f32 %v1022, %v1020
        %v1024 = vxor.u32 %v1023, 2147483648
        %v1025 = vsel %vm904, %v1024, %v1023
        %v1026 = vsub.s32 4, %v1002
        %v1027 = vsel %vm904, %v1026, %v1002
        %v1028 = vsel %vm903, %v891, %v1025
        %v1029 = vsel %vm903, 0, %v1027
        %v1030 = vmul.f32 %v1028, %v1028
        %v1031 = vmul.f32 %v1030, -0.001358992
        %v1032 = vadd.f32 %v1031, 0.041655596
        %v1033 = vmul.f32 %v1030, %v1032
        %v1034 = vadd.f32 %v1033, -0.4999988
        %v1035 = vmul.f32 %v1030, %v1034
        %v1036 = vadd.f32 1.0, %v1035
        %v1037 = vmul.f32 %v1028, %v1028
        %v1038 = vmul.f32 %v1037, -0.00019511016
        %v1039 = vadd.f32 %v1038, 0.008332121
        %v1040 = vmul.f32 %v1037, %v1039
        %v1041 = vadd.f32 %v1040, -0.16666654
        %v1042 = vmul.f32 %v1037, %v1041
        %v1043 = vadd.f32 %v1042, 1.0
        %v1044 = vmul.f32 %v1043, %v1028
        %vm1045 = vweird.f32 %v891
        %v1046 = vadd.s32 %v1029, 3
        %v1047 = vand.u32 %v1046, 3
        %vm1048 = vcmp.lt.s32.totalorder %v1047, 2
        %vm1049 = vcmp.eq.s32.totalorder %v1047, 0
        %v1050 = vxor.u32 %v1044, 2147483648
        %v1051 = vsel %vm1049, %v1036, %v1050
        %vm1052 = vcmp.eq.s32.totalorder %v1047, 2
        %v1053 = vxor.u32 %v1036, 2147483648
        %v1054 = vsel %vm1052, %v1053, %v1044
        %v1055 = vsel %vm1048, %v1051, %v1054
        %v1056 = vsel %vm1045, nan, %v1055
        %v1057 = vand.u32 2147483647, %v894
        %vm1058 = vcmp.le.f32.partialorder %v1057, 0.7853982
        %vm1059 = vcmp.lt.s32.totalorder %v894, 0
        %v1060 = vand.u32 %v894, 2139095040
        %v1061 = vshrl.u32 %v1060, 23
        %v1062 = vsub.s32 %v1061, 127
        %v1063 = vand.u32 2147483647, %v894
        %v1064 = vand.u32 %v1063, 8388607
        %v1065 = vor.u32 %v1064, 8388608
        %v1066 = vsub.s32 0, %v1065
        %v1067 = vadd.s32 %v1062, 1
        %vm1068 = vcmp.gt.s32.totalorder %v1067, 0
        %v1069 = vsel %vm1068, %v1067, 0
        %v1070 = vshrl.u32 %v1069, 5
        %v1071 = vand.u32 %v1069, 31
        %v1072 = vsub.s32 32, %v1071
        %v1073 = vshrl.u32 683565275, %v1072
        %v1074 = vshll.u32 683565275, %v1071
        %v1075 = vshrl.u32 2475754826, %v1072
        %v1076 = vor.u32 %v1074, %v1075
        %v1077 = vshll.u32 2475754826, %v1071
        %v1078 = vshrl.u32 2131351028, %v1072
        %v1079 = vor.u32 %v1077, %v1078
        %v1080 = vshll.u32 2131351028, %v1071
        %v1081 = vshrl.u32 2102212464, %v1072
        %v1082 = vor.u32 %v1080, %v1081
        %v1083 = vshll.u32 2102212464, %v1071
        %v1084 = vshrl.u32 920167782, %v1072
        %v1085 = vor.u32 %v1083, %v1084
        %v1086 = vshll.u32 920167782, %v1071
        %v1087 = vshrl.u32 1326507024, %v1072
        %v1088 = vor.u32 %v1086, %v1087
        %vm1089 = vcmp.lt.s32.totalorder %v1070, 1
        %vm1090 = vcmp.lt.s32.totalorder %v1070, 2
        %vm1091 = vcmp.lt.s32.totalorder %v1070, 3
        %vm1092 = vcmp.lt.s32.totalorder %v1070, 4
        %v1093 = vsel %vm1089, %v1073, %v1076
        %v1094 = vsel %vm1092, %v1082, 2102212464
        %v1095 = vsel %vm1091, %v1079, %v1094
        %v1096 = vsel %vm1090, %v1093, %v1095
        %v1097 = vsel %vm1089, %v1076, %v1079
        %v1098 = vsel %vm1092, %v1085, 920167782
        %v1099 = vsel %vm1091, %v1082, %v1098
        %v1100 = vsel %vm1090, %v1097, %v1099
        %v1101 = vsel %vm1089, %v1079, %v1082
        %v1102 = vsel %vm1092, %v1088, 1326507024
        %v1103 = vsel %vm1091, %v1085, %v1102
        %v1104 = vsel %vm1090, %v1101, %v1103
        %v1105 = vshll.u32 %v1065, 8
        %v1106 = vand.u32 %v1105, 65535
        %v1107 = vshrl.u32 %v1105, 16
        %v1108 = vand.u32 %v1104, 65535
        %v1109 = vshrl.u32 %v1104, 16
        %v1110 = vmul.u32 %v1106, %v1108
        %v1111 = vmul.u32 %v1106, %v1109
        %v1112 = vmul.u32 %v1107, %v1108
        %v1113 = vmul.u32 %v1107, %v1109
        %v1114 = vshll.u32 %v1111, 16
        %v1115 = vshrl.u32 %v1111, 16
        %v1116 = vshll.u32 %v1112, 16
        %v1117 = vshrl.u32 %v1112, 16
        %vm1118 = vc.u32 %v1110, %v1114
        %v1119 = vsel %vm1118, 1, 0
        %v1120 = vadd.s32 %v1110, %v1114
        %v1121 = vadd.s32 %v1113, %v1119
        %vm1122 = vc.u32 %v1120, %v1116
        %v1123 = vsel %vm1122, 1, 0
        %v1124 = vadd.s32 %v1120, %v1116
        %v1125 = vadd.s32 %v1121, %v1123
        %v1126 = vadd.s32 %v1125, %v1115
        %v1127 = vadd.s32 %v1126, %v1117
        %v1128 = vand.u32 %v1105, 65535
        %v1129 = vshrl.u32 %v1105, 16
        %v1130 = vand.u32 %v1100, 65535
        %v1131 = vshrl.u32 %v1100, 16
        %v1132 = vmul.u32 %v1128, %v1130
        %v1133 = vmul.u32 %v1128, %v1131
        %v1134 = vmul.u32 %v1129, %v1130
        %v1135 = vmul.u32 %v1129, %v1131
        %v1136 = vshll.u32 %v1133, 16
        %v1137 = vshrl.u32 %v1133, 16
        %v1138 = vshll.u32 %v1134, 16
        %v1139 = vshrl.u32 %v1134, 16
        %vm1140 = vc.u32 %v1132, %v1136
        %v1141 = vsel %vm1140, 1, 0
        %v1142 = vadd.s32 %v1132, %v1136
        %v1143 = vadd.s32 %v1135, %v1141
        %vm1144 = vc.u32 %v1142, %v1138
        %v1145 = vsel %vm1144, 1, 0
        %v1146 = vadd.s32 %v1142, %v1138
        %v1147 = vadd.s32 %v1143, %v1145
        %v1148 = vadd.s32 %v1147, %v1137
        %v1149 = vadd.s32 %v1148, %v1139
        %v1150 = vmul.u32 %v1105, %v1096
        %v1151 = vadd.s32 %v1127, %v1146
        %vm1152 = vc.u32 %v1127, %v1146
        %v1153 = vadd.s32 %v1149, 1
        %v1154 = vsel %vm1152, %v1153, %v1149
        %v1155 = vadd.s32 %v1150, %v1154
        %v1156 = vadd.s32 %v1155, 536870912
        %v1157 = vshrl.u32 %v1156, 30
        %v1158 = vshll.u32 %v1157, 30
        %v1159 = vsub.s32 %v1155, %v1158
        %vm1160 = vcmp.lt.s32.totalorder %v1159, 0
        %v1161 = vsub.s32 0, %v1159
        %v1162 = vsel %vm1160, %v1161, %v1159
        %v1163 = vclz %v1162
        %v1164 = vsub.s32 %v1163, 2
        %vm1165 = vcmp.gt.s32.totalorder 0, %v1164
        %v1166 = vsel %vm1165, 0, %v1164
        %v1167 = vsub.s32 32, %v1166
        %v1168 = vshll.u32 %v1159, %v1166
        %v1169 = vshrl.u32 %v1151, %v1167
        %v1170 = vor.u32 %v1168, %v1169
        %v1171 = vsub.s32 4294967266, %v1166
        %v1172 = vadd.s32 %v1171, 127
        %v1173 = vshll.u32 %v1172, 23
        %v1174 = vor.u32 4788187, %v1173
        %v1175 = vand.u32 2147483647, %v1174
        %v1177 = vcvt.s32.f32 %v1170
        %v1178 = vmul.f32 %v1177, %v1175
        %v1179 = vxor.u32 %v1178, 2147483648
        %v1180 = vsel %vm1059, %v1179, %v1178
        %v1181 = vsub.s32 4, %v1157
        %v1182 = vsel %vm1059, %v1181, %v1157
        %v1183 = vsel %vm1058, %v894, %v1180
        %v1184 = vsel %vm1058, 0, %v1182
        %v1185 = vmul.f32 %v1183, %v1183
        %v1186 = vmul.f32 %v1185, -0.001358992
        %v1187 = vadd.f32 %v1186, 0.041655596
        %v1188 = vmul.f32 %v1185, %v1187
        %v1189 = vadd.f32 %v1188, -0.4999988
        %v1190 = vmul.f32 %v1185, %v1189
        %v1191 = vadd.f32 1.0, %v1190
        %v1192 = vmul.f32 %v1183, %v1183
        %v1193 = vmul.f32 %v1192, -0.00019511016
        %v1194 = vadd.f32 %v1193, 0.008332121
        %v1195 = vmul.f32 %v1192, %v1194
        %v1196 = vadd.f32 %v1195, -0.16666654
        %v1197 = vmul.f32 %v1192, %v1196
        %v1198 = vadd.f32 %v1197, 1.0
        %v1199 = vmul.f32 %v1198, %v1183
        %vm1200 = vweird.f32 %v894
        %v1201 = vadd.s32 %v1184, 3
        %v1202 = vand.u32 %v1201, 3
        %vm1203 = vcmp.lt.s32.totalorder %v1202, 2
        %vm1204 = vcmp.eq.s32.totalorder %v1202, 0
        %v1205 = vxor.u32 %v1199, 2147483648
        %v1206 = vsel %vm1204, %v1191, %v1205
        %vm1207 = vcmp.eq.s32.totalorder %v1202, 2
        %v1208 = vxor.u32 %v1191, 2147483648
        %v1209 = vsel %vm1207, %v1208, %v1199
        %v1210 = vsel %vm1203, %v1206, %v1209
        %v1211 = vsel %vm1200, nan, %v1210
        %v1212 = vand.u32 2147483647, %v897
        %vm1213 = vcmp.le.f32.partialorder %v1212, 0.7853982
        %vm1214 = vcmp.lt.s32.totalorder %v897, 0
        %v1215 = vand.u32 %v897, 2139095040
        %v1216 = vshrl.u32 %v1215, 23
        %v1217 = vsub.s32 %v1216, 127
        %v1218 = vand.u32 2147483647, %v897
        %v1219 = vand.u32 %v1218, 8388607
        %v1220 = vor.u32 %v1219, 8388608
        %v1221 = vsub.s32 0, %v1220
        %v1222 = vadd.s32 %v1217, 1
        %vm1223 = vcmp.gt.s32.totalorder %v1222, 0
        %v1224 = vsel %vm1223, %v1222, 0
        %v1225 = vshrl.u32 %v1224, 5
        %v1226 = vand.u32 %v1224, 31
        %v1227 = vsub.s32 32, %v1226
        %v1228 = vshrl.u32 683565275, %v1227
        %v1229 = vshll.u32 683565275, %v1226
        %v1230 = vshrl.u32 2475754826, %v1227
        %v1231 = vor.u32 %v1229, %v1230
        %v1232 = vshll.u32 2475754826, %v1226
        %v1233 = vshrl.u32 2131351028, %v1227
        %v1234 = vor.u32 %v1232, %v1233
        %v1235 = vshll.u32 2131351028, %v1226
        %v1236 = vshrl.u32 2102212464, %v1227
        %v1237 = vor.u32 %v1235, %v1236
        %v1238 = vshll.u32 2102212464, %v1226
        %v1239 = vshrl.u32 920167782, %v1227
        %v1240 = vor.u32 %v1238, %v1239
        %v1241 = vshll.u32 920167782, %v1226
        %v1242 = vshrl.u32 1326507024, %v1227
        %v1243 = vor.u32 %v1241, %v1242
        %vm1244 = vcmp.lt.s32.totalorder %v1225, 1
        %vm1245 = vcmp.lt.s32.totalorder %v1225, 2
        %vm1246 = vcmp.lt.s32.totalorder %v1225, 3
        %vm1247 = vcmp.lt.s32.totalorder %v1225, 4
        %v1248 = vsel %vm1244, %v1228, %v1231
        %v1249 = vsel %vm1247, %v1237, 2102212464
        %v1250 = vsel %vm1246, %v1234, %v1249
        %v1251 = vsel %vm1245, %v1248, %v1250
        %v1252 = vsel %vm1244, %v1231, %v1234
        %v1253 = vsel %vm1247, %v1240, 920167782
        %v1254 = vsel %vm1246, %v1237, %v1253
        %v1255 = vsel %vm1245, %v1252, %v1254
        %v1256 = vsel %vm1244, %v1234, %v1237
        %v1257 = vsel %vm1247, %v1243, 1326507024
        %v1258 = vsel %vm1246, %v1240, %v1257
        %v1259 = vsel %vm1245, %v1256, %v1258
        %v1260 = vshll.u32 %v1220, 8
        %v1261 = vand.u32 %v1260, 65535
        %v1262 = vshrl.u32 %v1260, 16
        %v1263 = vand.u32 %v1259, 65535
        %v1264 = vshrl.u32 %v1259, 16
        %v1265 = vmul.u32 %v1261, %v1263
        %v1266 = vmul.u32 %v1261, %v1264
        %v1267 = vmul.u32 %v1262, %v1263
        %v1268 = vmul.u32 %v1262, %v1264
        %v1269 = vshll.u32 %v1266, 16
        %v1270 = vshrl.u32 %v1266, 16
        %v1271 = vshll.u32 %v1267, 16
        %v1272 = vshrl.u32 %v1267, 16
        %vm1273 = vc.u32 %v1265, %v1269
        %v1274 = vsel %vm1273, 1, 0
        %v1275 = vadd.s32 %v1265, %v1269
        %v1276 = vadd.s32 %v1268, %v1274
        %vm1277 = vc.u32 %v1275, %v1271
        %v1278 = vsel %vm1277, 1, 0
        %v1279 = vadd.s32 %v1275, %v1271
        %v1280 = vadd.s32 %v1276, %v1278
        %v1281 = vadd.s32 %v1280, %v1270
        %v1282 = vadd.s32 %v1281, %v1272
        %v1283 = vand.u32 %v1260, 65535
        %v1284 = vshrl.u32 %v1260, 16
        %v1285 = vand.u32 %v1255, 65535
        %v1286 = vshrl.u32 %v1255, 16
        %v1287 = vmul.u32 %v1283, %v1285
        %v1288 = vmul.u32 %v1283, %v1286
        %v1289 = vmul.u32 %v1284, %v1285
        %v1290 = vmul.u32 %v1284, %v1286
        %v1291 = vshll.u32 %v1288, 16
        %v1292 = vshrl.u32 %v1288, 16
        %v1293 = vshll.u32 %v1289, 16
        %v1294 = vshrl.u32 %v1289, 16
        %vm1295 = vc.u32 %v1287, %v1291
        %v1296 = vsel %vm1295, 1, 0
        %v1297 = vadd.s32 %v1287, %v1291
        %v1298 = vadd.s32 %v1290, %v1296
        %vm1299 = vc.u32 %v1297, %v1293
        %v1300 = vsel %vm1299, 1, 0
        %v1301 = vadd.s32 %v1297, %v1293
        %v1302 = vadd.s32 %v1298, %v1300
        %v1303 = vadd.s32 %v1302, %v1292
        %v1304 = vadd.s32 %v1303, %v1294
        %v1305 = vmul.u32 %v1260, %v1251
        %v1306 = vadd.s32 %v1282, %v1301
        %vm1307 = vc.u32 %v1282, %v1301
        %v1308 = vadd.s32 %v1304, 1
        %v1309 = vsel %vm1307, %v1308, %v1304
        %v1310 = vadd.s32 %v1305, %v1309
        %v1311 = vadd.s32 %v1310, 536870912
        %v1312 = vshrl.u32 %v1311, 30
        %v1313 = vshll.u32 %v1312, 30
        %v1314 = vsub.s32 %v1310, %v1313
        %vm1315 = vcmp.lt.s32.totalorder %v1314, 0
        %v1316 = vsub.s32 0, %v1314
        %v1317 = vsel %vm1315, %v1316, %v1314
        %v1318 = vclz %v1317
        %v1319 = vsub.s32 %v1318, 2
        %vm1320 = vcmp.gt.s32.totalorder 0, %v1319
        %v1321 = vsel %vm1320, 0, %v1319
        %v1322 = vsub.s32 32, %v1321
        %v1323 = vshll.u32 %v1314, %v1321
        %v1324 = vshrl.u32 %v1306, %v1322
        %v1325 = vor.u32 %v1323, %v1324
        %v1326 = vsub.s32 4294967266, %v1321
        %v1327 = vadd.s32 %v1326, 127
        %v1328 = vshll.u32 %v1327, 23
        %v1329 = vor.u32 4788187, %v1328
        %v1330 = vand.u32 2147483647, %v1329
        %v1332 = vcvt.s32.f32 %v1325
        %v1333 = vmul.f32 %v1332, %v1330
        %v1334 = vxor.u32 %v1333, 2147483648
        %v1335 = vsel %vm1214, %v1334, %v1333
        %v1336 = vsub.s32 4, %v1312
        %v1337 = vsel %vm1214, %v1336, %v1312
        %v1338 = vsel %vm1213, %v897, %v1335
        %v1339 = vsel %vm1213, 0, %v1337
        %v1340 = vmul.f32 %v1338, %v1338
        %v1341 = vmul.f32 %v1340, -0.001358992
        %v1342 = vadd.f32 %v1341, 0.041655596
        %v1343 = vmul.f32 %v1340, %v1342
        %v1344 = vadd.f32 %v1343, -0.4999988
        %v1345 = vmul.f32 %v1340, %v1344
        %v1346 = vadd.f32 1.0, %v1345
        %v1347 = vmul.f32 %v1338, %v1338
        %v1348 = vmul.f32 %v1347, -0.00019511016
        %v1349 = vadd.f32 %v1348, 0.008332121
        %v1350 = vmul.f32 %v1347, %v1349
        %v1351 = vadd.f32 %v1350, -0.16666654
        %v1352 = vmul.f32 %v1347, %v1351
        %v1353 = vadd.f32 %v1352, 1.0
        %v1354 = vmul.f32 %v1353, %v1338
        %vm1355 = vweird.f32 %v897
        %v1356 = vadd.s32 %v1339, 3
        %v1357 = vand.u32 %v1356, 3
        %vm1358 = vcmp.lt.s32.totalorder %v1357, 2
        %vm1359 = vcmp.eq.s32.totalorder %v1357, 0
        %v1360 = vxor.u32 %v1354, 2147483648
        %v1361 = vsel %vm1359, %v1346, %v1360
        %vm1362 = vcmp.eq.s32.totalorder %v1357, 2
        %v1363 = vxor.u32 %v1346, 2147483648
        %v1364 = vsel %vm1362, %v1363, %v1354
        %v1365 = vsel %vm1358, %v1361, %v1364
        %v1366 = vsel %vm1355, nan, %v1365
        %v1367 = vand.u32 2147483647, %v900
        %vm1368 = vcmp.le.f32.partialorder %v1367, 0.7853982
        %vm1369 = vcmp.lt.s32.totalorder %v900, 0
        %v1370 = vand.u32 %v900, 2139095040
        %v1371 = vshrl.u32 %v1370, 23
        %v1372 = vsub.s32 %v1371, 127
        %v1373 = vand.u32 2147483647, %v900
        %v1374 = vand.u32 %v1373, 8388607
        %v1375 = vor.u32 %v1374, 8388608
        %v1376 = vsub.s32 0, %v1375
        %v1377 = vadd.s32 %v1372, 1
        %vm1378 = vcmp.gt.s32.totalorder %v1377, 0
        %v1379 = vsel %vm1378, %v1377, 0
        %v1380 = vshrl.u32 %v1379, 5
        %v1381 = vand.u32 %v1379, 31
        %v1382 = vsub.s32 32, %v1381
        %v1383 = vshrl.u32 683565275, %v1382
        %v1384 = vshll.u32 683565275, %v1381
        %v1385 = vshrl.u32 2475754826, %v1382
        %v1386 = vor.u32 %v1384, %v1385
        %v1387 = vshll.u32 2475754826, %v1381
        %v1388 = vshrl.u32 2131351028, %v1382
        %v1389 = vor.u32 %v1387, %v1388
        %v1390 = vshll.u32 2131351028, %v1381
        %v1391 = vshrl.u32 2102212464, %v1382
        %v1392 = vor.u32 %v1390, %v1391
        %v1393 = vshll.u32 2102212464, %v1381
        %v1394 = vshrl.u32 920167782, %v1382
        %v1395 = vor.u32 %v1393, %v1394
        %v1396 = vshll.u32 920167782, %v1381
        %v1397 = vshrl.u32 1326507024, %v1382
        %v1398 = vor.u32 %v1396, %v1397
        %vm1399 = vcmp.lt.s32.totalorder %v1380, 1
        %vm1400 = vcmp.lt.s32.totalorder %v1380, 2
        %vm1401 = vcmp.lt.s32.totalorder %v1380, 3
        %vm1402 = vcmp.lt.s32.totalorder %v1380, 4
        %v1403 = vsel %vm1399, %v1383, %v1386
        %v1404 = vsel %vm1402, %v1392, 2102212464
        %v1405 = vsel %vm1401, %v1389, %v1404
        %v1406 = vsel %vm1400, %v1403, %v1405
        %v1407 = vsel %vm1399, %v1386, %v1389
        %v1408 = vsel %vm1402, %v1395, 920167782
        %v1409 = vsel %vm1401, %v1392, %v1408
        %v1410 = vsel %vm1400, %v1407, %v1409
        %v1411 = vsel %vm1399, %v1389, %v1392
        %v1412 = vsel %vm1402, %v1398, 1326507024
        %v1413 = vsel %vm1401, %v1395, %v1412
        %v1414 = vsel %vm1400, %v1411, %v1413
        %v1415 = vshll.u32 %v1375, 8
        %v1416 = vand.u32 %v1415, 65535
        %v1417 = vshrl.u32 %v1415, 16
        %v1418 = vand.u32 %v1414, 65535
        %v1419 = vshrl.u32 %v1414, 16
        %v1420 = vmul.u32 %v1416, %v1418
        %v1421 = vmul.u32 %v1416, %v1419
        %v1422 = vmul.u32 %v1417, %v1418
        %v1423 = vmul.u32 %v1417, %v1419
        %v1424 = vshll.u32 %v1421, 16
        %v1425 = vshrl.u32 %v1421, 16
        %v1426 = vshll.u32 %v1422, 16
        %v1427 = vshrl.u32 %v1422, 16
        %vm1428 = vc.u32 %v1420, %v1424
        %v1429 = vsel %vm1428, 1, 0
        %v1430 = vadd.s32 %v1420, %v1424
        %v1431 = vadd.s32 %v1423, %v1429
        %vm1432 = vc.u32 %v1430, %v1426
        %v1433 = vsel %vm1432, 1, 0
        %v1434 = vadd.s32 %v1430, %v1426
        %v1435 = vadd.s32 %v1431, %v1433
        %v1436 = vadd.s32 %v1435, %v1425
        %v1437 = vadd.s32 %v1436, %v1427
        %v1438 = vand.u32 %v1415, 65535
        %v1439 = vshrl.u32 %v1415, 16
        %v1440 = vand.u32 %v1410, 65535
        %v1441 = vshrl.u32 %v1410, 16
        %v1442 = vmul.u32 %v1438, %v1440
        %v1443 = vmul.u32 %v1438, %v1441
        %v1444 = vmul.u32 %v1439, %v1440
        %v1445 = vmul.u32 %v1439, %v1441
        %v1446 = vshll.u32 %v1443, 16
        %v1447 = vshrl.u32 %v1443, 16
        %v1448 = vshll.u32 %v1444, 16
        %v1449 = vshrl.u32 %v1444, 16
        %vm1450 = vc.u32 %v1442, %v1446
        %v1451 = vsel %vm1450, 1, 0
        %v1452 = vadd.s32 %v1442, %v1446
        %v1453 = vadd.s32 %v1445, %v1451
        %vm1454 = vc.u32 %v1452, %v1448
        %v1455 = vsel %vm1454, 1, 0
        %v1456 = vadd.s32 %v1452, %v1448
        %v1457 = vadd.s32 %v1453, %v1455
        %v1458 = vadd.s32 %v1457, %v1447
        %v1459 = vadd.s32 %v1458, %v1449
        %v1460 = vmul.u32 %v1415, %v1406
        %v1461 = vadd.s32 %v1437, %v1456
        %vm1462 = vc.u32 %v1437, %v1456
        %v1463 = vadd.s32 %v1459, 1
        %v1464 = vsel %vm1462, %v1463, %v1459
        %v1465 = vadd.s32 %v1460, %v1464
        %v1466 = vadd.s32 %v1465, 536870912
        %v1467 = vshrl.u32 %v1466, 30
        %v1468 = vshll.u32 %v1467, 30
        %v1469 = vsub.s32 %v1465, %v1468
        %vm1470 = vcmp.lt.s32.totalorder %v1469, 0
        %v1471 = vsub.s32 0, %v1469
        %v1472 = vsel %vm1470, %v1471, %v1469
        %v1473 = vclz %v1472
        %v1474 = vsub.s32 %v1473, 2
        %vm1475 = vcmp.gt.s32.totalorder 0, %v1474
        %v1476 = vsel %vm1475, 0, %v1474
        %v1477 = vsub.s32 32, %v1476
        %v1478 = vshll.u32 %v1469, %v1476
        %v1479 = vshrl.u32 %v1461, %v1477
        %v1480 = vor.u32 %v1478, %v1479
        %v1481 = vsub.s32 4294967266, %v1476
        %v1482 = vadd.s32 %v1481, 127
        %v1483 = vshll.u32 %v1482, 23
        %v1484 = vor.u32 4788187, %v1483
        %v1485 = vand.u32 2147483647, %v1484
        %v1487 = vcvt.s32.f32 %v1480
        %v1488 = vmul.f32 %v1487, %v1485
        %v1489 = vxor.u32 %v1488, 2147483648
        %v1490 = vsel %vm1369, %v1489, %v1488
        %v1491 = vsub.s32 4, %v1467
        %v1492 = vsel %vm1369, %v1491, %v1467
        %v1493 = vsel %vm1368, %v900, %v1490
        %v1494 = vsel %vm1368, 0, %v1492
        %v1495 = vmul.f32 %v1493, %v1493
        %v1496 = vmul.f32 %v1495, -0.001358992
        %v1497 = vadd.f32 %v1496, 0.041655596
        %v1498 = vmul.f32 %v1495, %v1497
        %v1499 = vadd.f32 %v1498, -0.4999988
        %v1500 = vmul.f32 %v1495, %v1499
        %v1501 = vadd.f32 1.0, %v1500
        %v1502 = vmul.f32 %v1493, %v1493
        %v1503 = vmul.f32 %v1502, -0.00019511016
        %v1504 = vadd.f32 %v1503, 0.008332121
        %v1505 = vmul.f32 %v1502, %v1504
        %v1506 = vadd.f32 %v1505, -0.16666654
        %v1507 = vmul.f32 %v1502, %v1506
        %v1508 = vadd.f32 %v1507, 1.0
        %v1509 = vmul.f32 %v1508, %v1493
        %vm1510 = vweird.f32 %v900
        %v1511 = vadd.s32 %v1494, 3
        %v1512 = vand.u32 %v1511, 3
        %vm1513 = vcmp.lt.s32.totalorder %v1512, 2
        %vm1514 = vcmp.eq.s32.totalorder %v1512, 0
        %v1515 = vxor.u32 %v1509, 2147483648
        %v1516 = vsel %vm1514, %v1501, %v1515
        %vm1517 = vcmp.eq.s32.totalorder %v1512, 2
        %v1518 = vxor.u32 %v1501, 2147483648
        %v1519 = vsel %vm1517, %v1518, %v1509
        %v1520 = vsel %vm1513, %v1516, %v1519
        %v1521 = vsel %vm1510, nan, %v1520
        %1523 = vset.pattern.permute.xlu0 32
        %1524 = vperm.xlu0 %1523, %v836
        %v1525 = vpop.permute.xlu0 %1524
        %1528 = vset.pattern.permute.xlu0 32
        %1529 = vperm.xlu0 %1528, %v837
        %v1530 = vpop.permute.xlu0 %1529
        %1533 = vset.pattern.permute.xlu0 32
        %1534 = vperm.xlu0 %1533, %v838
        %v1535 = vpop.permute.xlu0 %1534
        %1538 = vset.pattern.permute.xlu0 32
        %1539 = vperm.xlu0 %1538, %v839
        %v1540 = vpop.permute.xlu0 %1539
        %v1542 = vsel %vm864, %v836, 0
        %v1544 = vsel %vm864, %v837, 0
        %v1546 = vsel %vm864, %v838, 0
        %v1548 = vsel %vm864, %v839, 0
        %1550 = vmatpush.msra.mxu0 0.0
        %1551 = vmatpush.msra.mxu0 0.0
        %1552 = vmatpush.msra.mxu0 0.0
        %1553 = vmatpush.msra.mxu0 0.0
        %1554 = vmatpush.msra.mxu0 0.0
        %1555 = vmatpush.msra.mxu0 0.0
        %1556 = vmatpush.msra.mxu0 0.0
        %1557 = vmatpush.msra.mxu0 0.0
        %1558 = vmatpush.msra.mxu0 0.0
        %1559 = vmatpush.msra.mxu0 0.0
        %1560 = vmatpush.msra.mxu0 0.0
        %1561 = vmatpush.msra.mxu0 0.0
        %1562 = vmatpush.msra.mxu0 %v1521
        %1563 = vmatpush.msra.mxu0 %v1366
        %1564 = vmatpush.msra.mxu0 %v1211
        %1565 = vmatpush.msra.mxu0 %v1056
        %1566 = vmatmul.f32.gmra.mxu0 %v1542
        %v1567 = vpop.f32.mrf.mxu0
        %v1568 = vadd.f32 %v1525, %v1567
        %1569 = vmatmul.f32.gmra.mxu0 %v1544
        %v1570 = vpop.f32.mrf.mxu0
        %v1571 = vadd.f32 %v1530, %v1570
        %1572 = vmatmul.f32.gmra.mxu0 %v1546
        %v1573 = vpop.f32.mrf.mxu0
        %v1574 = vadd.f32 %v1535, %v1573
        %1575 = vmatmul.f32.gmra.mxu0 %v1548
        %v1576 = vpop.f32.mrf.mxu0
        %v1577 = vadd.f32 %v1540, %v1576
        %1578 = vdwg.mxu0
        %v1579 = vand.u32 2147483647, %v1568
        %vm1580 = vcmp.le.f32.partialorder %v1579, 0.7853982
        %vm1581 = vcmp.lt.s32.totalorder %v1568, 0
        %v1582 = vand.u32 %v1568, 2139095040
        %v1583 = vshrl.u32 %v1582, 23
        %v1584 = vsub.s32 %v1583, 127
        %v1585 = vand.u32 2147483647, %v1568
        %v1586 = vand.u32 %v1585, 8388607
        %v1587 = vor.u32 %v1586, 8388608
        %v1588 = vsub.s32 0, %v1587
        %v1589 = vadd.s32 %v1584, 1
        %vm1590 = vcmp.gt.s32.totalorder %v1589, 0
        %v1591 = vsel %vm1590, %v1589, 0
        %v1592 = vshrl.u32 %v1591, 5
        %v1593 = vand.u32 %v1591, 31
        %v1594 = vsub.s32 32, %v1593
        %v1595 = vshrl.u32 683565275, %v1594
        %v1596 = vshll.u32 683565275, %v1593
        %v1597 = vshrl.u32 2475754826, %v1594
        %v1598 = vor.u32 %v1596, %v1597
        %v1599 = vshll.u32 2475754826, %v1593
        %v1600 = vshrl.u32 2131351028, %v1594
        %v1601 = vor.u32 %v1599, %v1600
        %v1602 = vshll.u32 2131351028, %v1593
        %v1603 = vshrl.u32 2102212464, %v1594
        %v1604 = vor.u32 %v1602, %v1603
        %v1605 = vshll.u32 2102212464, %v1593
        %v1606 = vshrl.u32 920167782, %v1594
        %v1607 = vor.u32 %v1605, %v1606
        %v1608 = vshll.u32 920167782, %v1593
        %v1609 = vshrl.u32 1326507024, %v1594
        %v1610 = vor.u32 %v1608, %v1609
        %vm1611 = vcmp.lt.s32.totalorder %v1592, 1
        %vm1612 = vcmp.lt.s32.totalorder %v1592, 2
        %vm1613 = vcmp.lt.s32.totalorder %v1592, 3
        %vm1614 = vcmp.lt.s32.totalorder %v1592, 4
        %v1615 = vsel %vm1611, %v1595, %v1598
        %v1616 = vsel %vm1614, %v1604, 2102212464
        %v1617 = vsel %vm1613, %v1601, %v1616
        %v1618 = vsel %vm1612, %v1615, %v1617
        %v1619 = vsel %vm1611, %v1598, %v1601
        %v1620 = vsel %vm1614, %v1607, 920167782
        %v1621 = vsel %vm1613, %v1604, %v1620
        %v1622 = vsel %vm1612, %v1619, %v1621
        %v1623 = vsel %vm1611, %v1601, %v1604
        %v1624 = vsel %vm1614, %v1610, 1326507024
        %v1625 = vsel %vm1613, %v1607, %v1624
        %v1626 = vsel %vm1612, %v1623, %v1625
        %v1627 = vshll.u32 %v1587, 8
        %v1628 = vand.u32 %v1627, 65535
        %v1629 = vshrl.u32 %v1627, 16
        %v1630 = vand.u32 %v1626, 65535
        %v1631 = vshrl.u32 %v1626, 16
        %v1632 = vmul.u32 %v1628, %v1630
        %v1633 = vmul.u32 %v1628, %v1631
        %v1634 = vmul.u32 %v1629, %v1630
        %v1635 = vmul.u32 %v1629, %v1631
        %v1636 = vshll.u32 %v1633, 16
        %v1637 = vshrl.u32 %v1633, 16
        %v1638 = vshll.u32 %v1634, 16
        %v1639 = vshrl.u32 %v1634, 16
        %vm1640 = vc.u32 %v1632, %v1636
        %v1641 = vsel %vm1640, 1, 0
        %v1642 = vadd.s32 %v1632, %v1636
        %v1643 = vadd.s32 %v1635, %v1641
        %vm1644 = vc.u32 %v1642, %v1638
        %v1645 = vsel %vm1644, 1, 0
        %v1646 = vadd.s32 %v1642, %v1638
        %v1647 = vadd.s32 %v1643, %v1645
        %v1648 = vadd.s32 %v1647, %v1637
        %v1649 = vadd.s32 %v1648, %v1639
        %v1650 = vand.u32 %v1627, 65535
        %v1651 = vshrl.u32 %v1627, 16
        %v1652 = vand.u32 %v1622, 65535
        %v1653 = vshrl.u32 %v1622, 16
        %v1654 = vmul.u32 %v1650, %v1652
        %v1655 = vmul.u32 %v1650, %v1653
        %v1656 = vmul.u32 %v1651, %v1652
        %v1657 = vmul.u32 %v1651, %v1653
        %v1658 = vshll.u32 %v1655, 16
        %v1659 = vshrl.u32 %v1655, 16
        %v1660 = vshll.u32 %v1656, 16
        %v1661 = vshrl.u32 %v1656, 16
        %vm1662 = vc.u32 %v1654, %v1658
        %v1663 = vsel %vm1662, 1, 0
        %v1664 = vadd.s32 %v1654, %v1658
        %v1665 = vadd.s32 %v1657, %v1663
        %vm1666 = vc.u32 %v1664, %v1660
        %v1667 = vsel %vm1666, 1, 0
        %v1668 = vadd.s32 %v1664, %v1660
        %v1669 = vadd.s32 %v1665, %v1667
        %v1670 = vadd.s32 %v1669, %v1659
        %v1671 = vadd.s32 %v1670, %v1661
        %v1672 = vmul.u32 %v1627, %v1618
        %v1673 = vadd.s32 %v1649, %v1668
        %vm1674 = vc.u32 %v1649, %v1668
        %v1675 = vadd.s32 %v1671, 1
        %v1676 = vsel %vm1674, %v1675, %v1671
        %v1677 = vadd.s32 %v1672, %v1676
        %v1678 = vadd.s32 %v1677, 536870912
        %v1679 = vshrl.u32 %v1678, 30
        %v1680 = vshll.u32 %v1679, 30
        %v1681 = vsub.s32 %v1677, %v1680
        %vm1682 = vcmp.lt.s32.totalorder %v1681, 0
        %v1683 = vsub.s32 0, %v1681
        %v1684 = vsel %vm1682, %v1683, %v1681
        %v1685 = vclz %v1684
        %v1686 = vsub.s32 %v1685, 2
        %vm1687 = vcmp.gt.s32.totalorder 0, %v1686
        %v1688 = vsel %vm1687, 0, %v1686
        %v1689 = vsub.s32 32, %v1688
        %v1690 = vshll.u32 %v1681, %v1688
        %v1691 = vshrl.u32 %v1673, %v1689
        %v1692 = vor.u32 %v1690, %v1691
        %v1693 = vsub.s32 4294967266, %v1688
        %v1694 = vadd.s32 %v1693, 127
        %v1695 = vshll.u32 %v1694, 23
        %v1696 = vor.u32 4788187, %v1695
        %v1697 = vand.u32 2147483647, %v1696
        %v1699 = vcvt.s32.f32 %v1692
        %v1700 = vmul.f32 %v1699, %v1697
        %v1701 = vxor.u32 %v1700, 2147483648
        %v1702 = vsel %vm1581, %v1701, %v1700
        %v1703 = vsub.s32 4, %v1679
        %v1704 = vsel %vm1581, %v1703, %v1679
        %v1705 = vsel %vm1580, %v1568, %v1702
        %v1706 = vsel %vm1580, 0, %v1704
        %v1707 = vmul.f32 %v1705, %v1705
        %v1708 = vmul.f32 %v1707, -0.001358992
        %v1709 = vadd.f32 %v1708, 0.041655596
        %v1710 = vmul.f32 %v1707, %v1709
        %v1711 = vadd.f32 %v1710, -0.4999988
        %v1712 = vmul.f32 %v1707, %v1711
        %v1713 = vadd.f32 1.0, %v1712
        %v1714 = vmul.f32 %v1705, %v1705
        %v1715 = vmul.f32 %v1714, -0.00019511016
        %v1716 = vadd.f32 %v1715, 0.008332121
        %v1717 = vmul.f32 %v1714, %v1716
        %v1718 = vadd.f32 %v1717, -0.16666654
        %v1719 = vmul.f32 %v1714, %v1718
        %v1720 = vadd.f32 %v1719, 1.0
        %v1721 = vmul.f32 %v1720, %v1705
        %vm1722 = vweird.f32 %v1568
        %v1723 = vadd.s32 %v1706, 3
        %v1724 = vand.u32 %v1723, 3
        %vm1725 = vcmp.lt.s32.totalorder %v1724, 2
        %vm1726 = vcmp.eq.s32.totalorder %v1724, 0
        %v1727 = vxor.u32 %v1721, 2147483648
        %v1728 = vsel %vm1726, %v1713, %v1727
        %vm1729 = vcmp.eq.s32.totalorder %v1724, 2
        %v1730 = vxor.u32 %v1713, 2147483648
        %v1731 = vsel %vm1729, %v1730, %v1721
        %v1732 = vsel %vm1725, %v1728, %v1731
        %v1733 = vsel %vm1722, nan, %v1732
        %v1734 = vand.u32 2147483647, %v1571
        %vm1735 = vcmp.le.f32.partialorder %v1734, 0.7853982
        %vm1736 = vcmp.lt.s32.totalorder %v1571, 0
        %v1737 = vand.u32 %v1571, 2139095040
        %v1738 = vshrl.u32 %v1737, 23
        %v1739 = vsub.s32 %v1738, 127
        %v1740 = vand.u32 2147483647, %v1571
        %v1741 = vand.u32 %v1740, 8388607
        %v1742 = vor.u32 %v1741, 8388608
        %v1743 = vsub.s32 0, %v1742
        %v1744 = vadd.s32 %v1739, 1
        %vm1745 = vcmp.gt.s32.totalorder %v1744, 0
        %v1746 = vsel %vm1745, %v1744, 0
        %v1747 = vshrl.u32 %v1746, 5
        %v1748 = vand.u32 %v1746, 31
        %v1749 = vsub.s32 32, %v1748
        %v1750 = vshrl.u32 683565275, %v1749
        %v1751 = vshll.u32 683565275, %v1748
        %v1752 = vshrl.u32 2475754826, %v1749
        %v1753 = vor.u32 %v1751, %v1752
        %v1754 = vshll.u32 2475754826, %v1748
        %v1755 = vshrl.u32 2131351028, %v1749
        %v1756 = vor.u32 %v1754, %v1755
        %v1757 = vshll.u32 2131351028, %v1748
        %v1758 = vshrl.u32 2102212464, %v1749
        %v1759 = vor.u32 %v1757, %v1758
        %v1760 = vshll.u32 2102212464, %v1748
        %v1761 = vshrl.u32 920167782, %v1749
        %v1762 = vor.u32 %v1760, %v1761
        %v1763 = vshll.u32 920167782, %v1748
        %v1764 = vshrl.u32 1326507024, %v1749
        %v1765 = vor.u32 %v1763, %v1764
        %vm1766 = vcmp.lt.s32.totalorder %v1747, 1
        %vm1767 = vcmp.lt.s32.totalorder %v1747, 2
        %vm1768 = vcmp.lt.s32.totalorder %v1747, 3
        %vm1769 = vcmp.lt.s32.totalorder %v1747, 4
        %v1770 = vsel %vm1766, %v1750, %v1753
        %v1771 = vsel %vm1769, %v1759, 2102212464
        %v1772 = vsel %vm1768, %v1756, %v1771
        %v1773 = vsel %vm1767, %v1770, %v1772
        %v1774 = vsel %vm1766, %v1753, %v1756
        %v1775 = vsel %vm1769, %v1762, 920167782
        %v1776 = vsel %vm1768, %v1759, %v1775
        %v1777 = vsel %vm1767, %v1774, %v1776
        %v1778 = vsel %vm1766, %v1756, %v1759
        %v1779 = vsel %vm1769, %v1765, 1326507024
        %v1780 = vsel %vm1768, %v1762, %v1779
        %v1781 = vsel %vm1767, %v1778, %v1780
        %v1782 = vshll.u32 %v1742, 8
        %v1783 = vand.u32 %v1782, 65535
        %v1784 = vshrl.u32 %v1782, 16
        %v1785 = vand.u32 %v1781, 65535
        %v1786 = vshrl.u32 %v1781, 16
        %v1787 = vmul.u32 %v1783, %v1785
        %v1788 = vmul.u32 %v1783, %v1786
        %v1789 = vmul.u32 %v1784, %v1785
        %v1790 = vmul.u32 %v1784, %v1786
        %v1791 = vshll.u32 %v1788, 16
        %v1792 = vshrl.u32 %v1788, 16
        %v1793 = vshll.u32 %v1789, 16
        %v1794 = vshrl.u32 %v1789, 16
        %vm1795 = vc.u32 %v1787, %v1791
        %v1796 = vsel %vm1795, 1, 0
        %v1797 = vadd.s32 %v1787, %v1791
        %v1798 = vadd.s32 %v1790, %v1796
        %vm1799 = vc.u32 %v1797, %v1793
        %v1800 = vsel %vm1799, 1, 0
        %v1801 = vadd.s32 %v1797, %v1793
        %v1802 = vadd.s32 %v1798, %v1800
        %v1803 = vadd.s32 %v1802, %v1792
        %v1804 = vadd.s32 %v1803, %v1794
        %v1805 = vand.u32 %v1782, 65535
        %v1806 = vshrl.u32 %v1782, 16
        %v1807 = vand.u32 %v1777, 65535
        %v1808 = vshrl.u32 %v1777, 16
        %v1809 = vmul.u32 %v1805, %v1807
        %v1810 = vmul.u32 %v1805, %v1808
        %v1811 = vmul.u32 %v1806, %v1807
        %v1812 = vmul.u32 %v1806, %v1808
        %v1813 = vshll.u32 %v1810, 16
        %v1814 = vshrl.u32 %v1810, 16
        %v1815 = vshll.u32 %v1811, 16
        %v1816 = vshrl.u32 %v1811, 16
        %vm1817 = vc.u32 %v1809, %v1813
        %v1818 = vsel %vm1817, 1, 0
        %v1819 = vadd.s32 %v1809, %v1813
        %v1820 = vadd.s32 %v1812, %v1818
        %vm1821 = vc.u32 %v1819, %v1815
        %v1822 = vsel %vm1821, 1, 0
        %v1823 = vadd.s32 %v1819, %v1815
        %v1824 = vadd.s32 %v1820, %v1822
        %v1825 = vadd.s32 %v1824, %v1814
        %v1826 = vadd.s32 %v1825, %v1816
        %v1827 = vmul.u32 %v1782, %v1773
        %v1828 = vadd.s32 %v1804, %v1823
        %vm1829 = vc.u32 %v1804, %v1823
        %v1830 = vadd.s32 %v1826, 1
        %v1831 = vsel %vm1829, %v1830, %v1826
        %v1832 = vadd.s32 %v1827, %v1831
        %v1833 = vadd.s32 %v1832, 536870912
        %v1834 = vshrl.u32 %v1833, 30
        %v1835 = vshll.u32 %v1834, 30
        %v1836 = vsub.s32 %v1832, %v1835
        %vm1837 = vcmp.lt.s32.totalorder %v1836, 0
        %v1838 = vsub.s32 0, %v1836
        %v1839 = vsel %vm1837, %v1838, %v1836
        %v1840 = vclz %v1839
        %v1841 = vsub.s32 %v1840, 2
        %vm1842 = vcmp.gt.s32.totalorder 0, %v1841
        %v1843 = vsel %vm1842, 0, %v1841
        %v1844 = vsub.s32 32, %v1843
        %v1845 = vshll.u32 %v1836, %v1843
        %v1846 = vshrl.u32 %v1828, %v1844
        %v1847 = vor.u32 %v1845, %v1846
        %v1848 = vsub.s32 4294967266, %v1843
        %v1849 = vadd.s32 %v1848, 127
        %v1850 = vshll.u32 %v1849, 23
        %v1851 = vor.u32 4788187, %v1850
        %v1852 = vand.u32 2147483647, %v1851
        %v1854 = vcvt.s32.f32 %v1847
        %v1855 = vmul.f32 %v1854, %v1852
        %v1856 = vxor.u32 %v1855, 2147483648
        %v1857 = vsel %vm1736, %v1856, %v1855
        %v1858 = vsub.s32 4, %v1834
        %v1859 = vsel %vm1736, %v1858, %v1834
        %v1860 = vsel %vm1735, %v1571, %v1857
        %v1861 = vsel %vm1735, 0, %v1859
        %v1862 = vmul.f32 %v1860, %v1860
        %v1863 = vmul.f32 %v1862, -0.001358992
        %v1864 = vadd.f32 %v1863, 0.041655596
        %v1865 = vmul.f32 %v1862, %v1864
        %v1866 = vadd.f32 %v1865, -0.4999988
        %v1867 = vmul.f32 %v1862, %v1866
        %v1868 = vadd.f32 1.0, %v1867
        %v1869 = vmul.f32 %v1860, %v1860
        %v1870 = vmul.f32 %v1869, -0.00019511016
        %v1871 = vadd.f32 %v1870, 0.008332121
        %v1872 = vmul.f32 %v1869, %v1871
        %v1873 = vadd.f32 %v1872, -0.16666654
        %v1874 = vmul.f32 %v1869, %v1873
        %v1875 = vadd.f32 %v1874, 1.0
        %v1876 = vmul.f32 %v1875, %v1860
        %vm1877 = vweird.f32 %v1571
        %v1878 = vadd.s32 %v1861, 3
        %v1879 = vand.u32 %v1878, 3
        %vm1880 = vcmp.lt.s32.totalorder %v1879, 2
        %vm1881 = vcmp.eq.s32.totalorder %v1879, 0
        %v1882 = vxor.u32 %v1876, 2147483648
        %v1883 = vsel %vm1881, %v1868, %v1882
        %vm1884 = vcmp.eq.s32.totalorder %v1879, 2
        %v1885 = vxor.u32 %v1868, 2147483648
        %v1886 = vsel %vm1884, %v1885, %v1876
        %v1887 = vsel %vm1880, %v1883, %v1886
        %v1888 = vsel %vm1877, nan, %v1887
        %v1889 = vand.u32 2147483647, %v1574
        %vm1890 = vcmp.le.f32.partialorder %v1889, 0.7853982
        %vm1891 = vcmp.lt.s32.totalorder %v1574, 0
        %v1892 = vand.u32 %v1574, 2139095040
        %v1893 = vshrl.u32 %v1892, 23
        %v1894 = vsub.s32 %v1893, 127
        %v1895 = vand.u32 2147483647, %v1574
        %v1896 = vand.u32 %v1895, 8388607
        %v1897 = vor.u32 %v1896, 8388608
        %v1898 = vsub.s32 0, %v1897
        %v1899 = vadd.s32 %v1894, 1
        %vm1900 = vcmp.gt.s32.totalorder %v1899, 0
        %v1901 = vsel %vm1900, %v1899, 0
        %v1902 = vshrl.u32 %v1901, 5
        %v1903 = vand.u32 %v1901, 31
        %v1904 = vsub.s32 32, %v1903
        %v1905 = vshrl.u32 683565275, %v1904
        %v1906 = vshll.u32 683565275, %v1903
        %v1907 = vshrl.u32 2475754826, %v1904
        %v1908 = vor.u32 %v1906, %v1907
        %v1909 = vshll.u32 2475754826, %v1903
        %v1910 = vshrl.u32 2131351028, %v1904
        %v1911 = vor.u32 %v1909, %v1910
        %v1912 = vshll.u32 2131351028, %v1903
        %v1913 = vshrl.u32 2102212464, %v1904
        %v1914 = vor.u32 %v1912, %v1913
        %v1915 = vshll.u32 2102212464, %v1903
        %v1916 = vshrl.u32 920167782, %v1904
        %v1917 = vor.u32 %v1915, %v1916
        %v1918 = vshll.u32 920167782, %v1903
        %v1919 = vshrl.u32 1326507024, %v1904
        %v1920 = vor.u32 %v1918, %v1919
        %vm1921 = vcmp.lt.s32.totalorder %v1902, 1
        %vm1922 = vcmp.lt.s32.totalorder %v1902, 2
        %vm1923 = vcmp.lt.s32.totalorder %v1902, 3
        %vm1924 = vcmp.lt.s32.totalorder %v1902, 4
        %v1925 = vsel %vm1921, %v1905, %v1908
        %v1926 = vsel %vm1924, %v1914, 2102212464
        %v1927 = vsel %vm1923, %v1911, %v1926
        %v1928 = vsel %vm1922, %v1925, %v1927
        %v1929 = vsel %vm1921, %v1908, %v1911
        %v1930 = vsel %vm1924, %v1917, 920167782
        %v1931 = vsel %vm1923, %v1914, %v1930
        %v1932 = vsel %vm1922, %v1929, %v1931
        %v1933 = vsel %vm1921, %v1911, %v1914
        %v1934 = vsel %vm1924, %v1920, 1326507024
        %v1935 = vsel %vm1923, %v1917, %v1934
        %v1936 = vsel %vm1922, %v1933, %v1935
        %v1937 = vshll.u32 %v1897, 8
        %v1938 = vand.u32 %v1937, 65535
        %v1939 = vshrl.u32 %v1937, 16
        %v1940 = vand.u32 %v1936, 65535
        %v1941 = vshrl.u32 %v1936, 16
        %v1942 = vmul.u32 %v1938, %v1940
        %v1943 = vmul.u32 %v1938, %v1941
        %v1944 = vmul.u32 %v1939, %v1940
        %v1945 = vmul.u32 %v1939, %v1941
        %v1946 = vshll.u32 %v1943, 16
        %v1947 = vshrl.u32 %v1943, 16
        %v1948 = vshll.u32 %v1944, 16
        %v1949 = vshrl.u32 %v1944, 16
        %vm1950 = vc.u32 %v1942, %v1946
        %v1951 = vsel %vm1950, 1, 0
        %v1952 = vadd.s32 %v1942, %v1946
        %v1953 = vadd.s32 %v1945, %v1951
        %vm1954 = vc.u32 %v1952, %v1948
        %v1955 = vsel %vm1954, 1, 0
        %v1956 = vadd.s32 %v1952, %v1948
        %v1957 = vadd.s32 %v1953, %v1955
        %v1958 = vadd.s32 %v1957, %v1947
        %v1959 = vadd.s32 %v1958, %v1949
        %v1960 = vand.u32 %v1937, 65535
        %v1961 = vshrl.u32 %v1937, 16
        %v1962 = vand.u32 %v1932, 65535
        %v1963 = vshrl.u32 %v1932, 16
        %v1964 = vmul.u32 %v1960, %v1962
        %v1965 = vmul.u32 %v1960, %v1963
        %v1966 = vmul.u32 %v1961, %v1962
        %v1967 = vmul.u32 %v1961, %v1963
        %v1968 = vshll.u32 %v1965, 16
        %v1969 = vshrl.u32 %v1965, 16
        %v1970 = vshll.u32 %v1966, 16
        %v1971 = vshrl.u32 %v1966, 16
        %vm1972 = vc.u32 %v1964, %v1968
        %v1973 = vsel %vm1972, 1, 0
        %v1974 = vadd.s32 %v1964, %v1968
        %v1975 = vadd.s32 %v1967, %v1973
        %vm1976 = vc.u32 %v1974, %v1970
        %v1977 = vsel %vm1976, 1, 0
        %v1978 = vadd.s32 %v1974, %v1970
        %v1979 = vadd.s32 %v1975, %v1977
        %v1980 = vadd.s32 %v1979, %v1969
        %v1981 = vadd.s32 %v1980, %v1971
        %v1982 = vmul.u32 %v1937, %v1928
        %v1983 = vadd.s32 %v1959, %v1978
        %vm1984 = vc.u32 %v1959, %v1978
        %v1985 = vadd.s32 %v1981, 1
        %v1986 = vsel %vm1984, %v1985, %v1981
        %v1987 = vadd.s32 %v1982, %v1986
        %v1988 = vadd.s32 %v1987, 536870912
        %v1989 = vshrl.u32 %v1988, 30
        %v1990 = vshll.u32 %v1989, 30
        %v1991 = vsub.s32 %v1987, %v1990
        %vm1992 = vcmp.lt.s32.totalorder %v1991, 0
        %v1993 = vsub.s32 0, %v1991
        %v1994 = vsel %vm1992, %v1993, %v1991
        %v1995 = vclz %v1994
        %v1996 = vsub.s32 %v1995, 2
        %vm1997 = vcmp.gt.s32.totalorder 0, %v1996
        %v1998 = vsel %vm1997, 0, %v1996
        %v1999 = vsub.s32 32, %v1998
        %v2000 = vshll.u32 %v1991, %v1998
        %v2001 = vshrl.u32 %v1983, %v1999
        %v2002 = vor.u32 %v2000, %v2001
        %v2003 = vsub.s32 4294967266, %v1998
        %v2004 = vadd.s32 %v2003, 127
        %v2005 = vshll.u32 %v2004, 23
        %v2006 = vor.u32 4788187, %v2005
        %v2007 = vand.u32 2147483647, %v2006
        %v2009 = vcvt.s32.f32 %v2002
        %v2010 = vmul.f32 %v2009, %v2007
        %v2011 = vxor.u32 %v2010, 2147483648
        %v2012 = vsel %vm1891, %v2011, %v2010
        %v2013 = vsub.s32 4, %v1989
        %v2014 = vsel %vm1891, %v2013, %v1989
        %v2015 = vsel %vm1890, %v1574, %v2012
        %v2016 = vsel %vm1890, 0, %v2014
        %v2017 = vmul.f32 %v2015, %v2015
        %v2018 = vmul.f32 %v2017, -0.001358992
        %v2019 = vadd.f32 %v2018, 0.041655596
        %v2020 = vmul.f32 %v2017, %v2019
        %v2021 = vadd.f32 %v2020, -0.4999988
        %v2022 = vmul.f32 %v2017, %v2021
        %v2023 = vadd.f32 1.0, %v2022
        %v2024 = vmul.f32 %v2015, %v2015
        %v2025 = vmul.f32 %v2024, -0.00019511016
        %v2026 = vadd.f32 %v2025, 0.008332121
        %v2027 = vmul.f32 %v2024, %v2026
        %v2028 = vadd.f32 %v2027, -0.16666654
        %v2029 = vmul.f32 %v2024, %v2028
        %v2030 = vadd.f32 %v2029, 1.0
        %v2031 = vmul.f32 %v2030, %v2015
        %vm2032 = vweird.f32 %v1574
        %v2033 = vadd.s32 %v2016, 3
        %v2034 = vand.u32 %v2033, 3
        %vm2035 = vcmp.lt.s32.totalorder %v2034, 2
        %vm2036 = vcmp.eq.s32.totalorder %v2034, 0
        %v2037 = vxor.u32 %v2031, 2147483648
        %v2038 = vsel %vm2036, %v2023, %v2037
        %vm2039 = vcmp.eq.s32.totalorder %v2034, 2
        %v2040 = vxor.u32 %v2023, 2147483648
        %v2041 = vsel %vm2039, %v2040, %v2031
        %v2042 = vsel %vm2035, %v2038, %v2041
        %v2043 = vsel %vm2032, nan, %v2042
        %v2044 = vand.u32 2147483647, %v1577
        %vm2045 = vcmp.le.f32.partialorder %v2044, 0.7853982
        %vm2046 = vcmp.lt.s32.totalorder %v1577, 0
        %v2047 = vand.u32 %v1577, 2139095040
        %v2048 = vshrl.u32 %v2047, 23
        %v2049 = vsub.s32 %v2048, 127
        %v2050 = vand.u32 2147483647, %v1577
        %v2051 = vand.u32 %v2050, 8388607
        %v2052 = vor.u32 %v2051, 8388608
        %v2053 = vsub.s32 0, %v2052
        %v2054 = vadd.s32 %v2049, 1
        %vm2055 = vcmp.gt.s32.totalorder %v2054, 0
        %v2056 = vsel %vm2055, %v2054, 0
        %v2057 = vshrl.u32 %v2056, 5
        %v2058 = vand.u32 %v2056, 31
        %v2059 = vsub.s32 32, %v2058
        %v2060 = vshrl.u32 683565275, %v2059
        %v2061 = vshll.u32 683565275, %v2058
        %v2062 = vshrl.u32 2475754826, %v2059
        %v2063 = vor.u32 %v2061, %v2062
        %v2064 = vshll.u32 2475754826, %v2058
        %v2065 = vshrl.u32 2131351028, %v2059
        %v2066 = vor.u32 %v2064, %v2065
        %v2067 = vshll.u32 2131351028, %v2058
        %v2068 = vshrl.u32 2102212464, %v2059
        %v2069 = vor.u32 %v2067, %v2068
        %v2070 = vshll.u32 2102212464, %v2058
        %v2071 = vshrl.u32 920167782, %v2059
        %v2072 = vor.u32 %v2070, %v2071
        %v2073 = vshll.u32 920167782, %v2058
        %v2074 = vshrl.u32 1326507024, %v2059
        %v2075 = vor.u32 %v2073, %v2074
        %vm2076 = vcmp.lt.s32.totalorder %v2057, 1
        %vm2077 = vcmp.lt.s32.totalorder %v2057, 2
        %vm2078 = vcmp.lt.s32.totalorder %v2057, 3
        %vm2079 = vcmp.lt.s32.totalorder %v2057, 4
        %v2080 = vsel %vm2076, %v2060, %v2063
        %v2081 = vsel %vm2079, %v2069, 2102212464
        %v2082 = vsel %vm2078, %v2066, %v2081
        %v2083 = vsel %vm2077, %v2080, %v2082
        %v2084 = vsel %vm2076, %v2063, %v2066
        %v2085 = vsel %vm2079, %v2072, 920167782
        %v2086 = vsel %vm2078, %v2069, %v2085
        %v2087 = vsel %vm2077, %v2084, %v2086
        %v2088 = vsel %vm2076, %v2066, %v2069
        %v2089 = vsel %vm2079, %v2075, 1326507024
        %v2090 = vsel %vm2078, %v2072, %v2089
        %v2091 = vsel %vm2077, %v2088, %v2090
        %v2092 = vshll.u32 %v2052, 8
        %v2093 = vand.u32 %v2092, 65535
        %v2094 = vshrl.u32 %v2092, 16
        %v2095 = vand.u32 %v2091, 65535
        %v2096 = vshrl.u32 %v2091, 16
        %v2097 = vmul.u32 %v2093, %v2095
        %v2098 = vmul.u32 %v2093, %v2096
        %v2099 = vmul.u32 %v2094, %v2095
        %v2100 = vmul.u32 %v2094, %v2096
        %v2101 = vshll.u32 %v2098, 16
        %v2102 = vshrl.u32 %v2098, 16
        %v2103 = vshll.u32 %v2099, 16
        %v2104 = vshrl.u32 %v2099, 16
        %vm2105 = vc.u32 %v2097, %v2101
        %v2106 = vsel %vm2105, 1, 0
        %v2107 = vadd.s32 %v2097, %v2101
        %v2108 = vadd.s32 %v2100, %v2106
        %vm2109 = vc.u32 %v2107, %v2103
        %v2110 = vsel %vm2109, 1, 0
        %v2111 = vadd.s32 %v2107, %v2103
        %v2112 = vadd.s32 %v2108, %v2110
        %v2113 = vadd.s32 %v2112, %v2102
        %v2114 = vadd.s32 %v2113, %v2104
        %v2115 = vand.u32 %v2092, 65535
        %v2116 = vshrl.u32 %v2092, 16
        %v2117 = vand.u32 %v2087, 65535
        %v2118 = vshrl.u32 %v2087, 16
        %v2119 = vmul.u32 %v2115, %v2117
        %v2120 = vmul.u32 %v2115, %v2118
        %v2121 = vmul.u32 %v2116, %v2117
        %v2122 = vmul.u32 %v2116, %v2118
        %v2123 = vshll.u32 %v2120, 16
        %v2124 = vshrl.u32 %v2120, 16
        %v2125 = vshll.u32 %v2121, 16
        %v2126 = vshrl.u32 %v2121, 16
        %vm2127 = vc.u32 %v2119, %v2123
        %v2128 = vsel %vm2127, 1, 0
        %v2129 = vadd.s32 %v2119, %v2123
        %v2130 = vadd.s32 %v2122, %v2128
        %vm2131 = vc.u32 %v2129, %v2125
        %v2132 = vsel %vm2131, 1, 0
        %v2133 = vadd.s32 %v2129, %v2125
        %v2134 = vadd.s32 %v2130, %v2132
        %v2135 = vadd.s32 %v2134, %v2124
        %v2136 = vadd.s32 %v2135, %v2126
        %v2137 = vmul.u32 %v2092, %v2083
        %v2138 = vadd.s32 %v2114, %v2133
        %vm2139 = vc.u32 %v2114, %v2133
        %v2140 = vadd.s32 %v2136, 1
        %v2141 = vsel %vm2139, %v2140, %v2136
        %v2142 = vadd.s32 %v2137, %v2141
        %v2143 = vadd.s32 %v2142, 536870912
        %v2144 = vshrl.u32 %v2143, 30
        %v2145 = vshll.u32 %v2144, 30
        %v2146 = vsub.s32 %v2142, %v2145
        %vm2147 = vcmp.lt.s32.totalorder %v2146, 0
        %v2148 = vsub.s32 0, %v2146
        %v2149 = vsel %vm2147, %v2148, %v2146
        %v2150 = vclz %v2149
        %v2151 = vsub.s32 %v2150, 2
        %vm2152 = vcmp.gt.s32.totalorder 0, %v2151
        %v2153 = vsel %vm2152, 0, %v2151
        %v2154 = vsub.s32 32, %v2153
        %v2155 = vshll.u32 %v2146, %v2153
        %v2156 = vshrl.u32 %v2138, %v2154
        %v2157 = vor.u32 %v2155, %v2156
        %v2158 = vsub.s32 4294967266, %v2153
        %v2159 = vadd.s32 %v2158, 127
        %v2160 = vshll.u32 %v2159, 23
        %v2161 = vor.u32 4788187, %v2160
        %v2162 = vand.u32 2147483647, %v2161
        %v2164 = vcvt.s32.f32 %v2157
        %v2165 = vmul.f32 %v2164, %v2162
        %v2166 = vxor.u32 %v2165, 2147483648
        %v2167 = vsel %vm2046, %v2166, %v2165
        %v2168 = vsub.s32 4, %v2144
        %v2169 = vsel %vm2046, %v2168, %v2144
        %v2170 = vsel %vm2045, %v1577, %v2167
        %v2171 = vsel %vm2045, 0, %v2169
        %v2172 = vmul.f32 %v2170, %v2170
        %v2173 = vmul.f32 %v2172, -0.001358992
        %v2174 = vadd.f32 %v2173, 0.041655596
        %v2175 = vmul.f32 %v2172, %v2174
        %v2176 = vadd.f32 %v2175, -0.4999988
        %v2177 = vmul.f32 %v2172, %v2176
        %v2178 = vadd.f32 1.0, %v2177
        %v2179 = vmul.f32 %v2170, %v2170
        %v2180 = vmul.f32 %v2179, -0.00019511016
        %v2181 = vadd.f32 %v2180, 0.008332121
        %v2182 = vmul.f32 %v2179, %v2181
        %v2183 = vadd.f32 %v2182, -0.16666654
        %v2184 = vmul.f32 %v2179, %v2183
        %v2185 = vadd.f32 %v2184, 1.0
        %v2186 = vmul.f32 %v2185, %v2170
        %vm2187 = vweird.f32 %v1577
        %v2188 = vadd.s32 %v2171, 3
        %v2189 = vand.u32 %v2188, 3
        %vm2190 = vcmp.lt.s32.totalorder %v2189, 2
        %vm2191 = vcmp.eq.s32.totalorder %v2189, 0
        %v2192 = vxor.u32 %v2186, 2147483648
        %v2193 = vsel %vm2191, %v2178, %v2192
        %vm2194 = vcmp.eq.s32.totalorder %v2189, 2
        %v2195 = vxor.u32 %v2178, 2147483648
        %v2196 = vsel %vm2194, %v2195, %v2186
        %v2197 = vsel %vm2190, %v2193, %v2196
        %v2198 = vsel %vm2187, nan, %v2197
        %2200 = vset.pattern.permute.xlu0 32
        %2201 = vperm.xlu0 %2200, %v840
        %v2202 = vpop.permute.xlu0 %2201
        %2205 = vset.pattern.permute.xlu0 32
        %2206 = vperm.xlu0 %2205, %v841
        %v2207 = vpop.permute.xlu0 %2206
        %2209 = vset.pattern.permute.xlu0 32
        %2210 = vperm.xlu0 %2209, %v842
        %v2211 = vpop.permute.xlu0 %2210
        %2213 = vset.pattern.permute.xlu0 32
        %2214 = vperm.xlu0 %2213, %v843
        %v2215 = vpop.permute.xlu0 %2214
        %v2216 = vsel %vm864, %v840, 0
        %v2218 = vsel %vm864, %v841, 0
        %v2220 = vsel %vm864, %v842, 0
        %v2222 = vsel %vm864, %v843, 0
        %2224 = vmatpush.msra.mxu0 0.0
        %2225 = vmatpush.msra.mxu0 0.0
        %2226 = vmatpush.msra.mxu0 0.0
        %2227 = vmatpush.msra.mxu0 0.0
        %2228 = vmatpush.msra.mxu0 0.0
        %2229 = vmatpush.msra.mxu0 0.0
        %2230 = vmatpush.msra.mxu0 0.0
        %2231 = vmatpush.msra.mxu0 0.0
        %2232 = vmatpush.msra.mxu0 0.0
        %2233 = vmatpush.msra.mxu0 0.0
        %2234 = vmatpush.msra.mxu0 0.0
        %2235 = vmatpush.msra.mxu0 0.0
        %2236 = vmatpush.msra.mxu0 %v2198
        %2237 = vmatpush.msra.mxu0 %v2043
        %2238 = vmatpush.msra.mxu0 %v1888
        %2239 = vmatpush.msra.mxu0 %v1733
        %2240 = vmatmul.f32.gmra.mxu0 %v2216
        %v2241 = vpop.f32.mrf.mxu0
        %v2242 = vadd.f32 %v2202, %v2241
        %2243 = vmatmul.f32.gmra.mxu0 %v2218
        %v2244 = vpop.f32.mrf.mxu0
        %2245 = vmatmul.f32.gmra.mxu0 %v2220
        %v2246 = vpop.f32.mrf.mxu0
        %2247 = vmatmul.f32.gmra.mxu0 %v2222
        %v2248 = vpop.f32.mrf.mxu0
        %2249 = vdwg.mxu0
        %2250 = vst [vmem:[%s160] sm:$0x1] %v2242
        %s2251 = sand.u32 %s93, 1
        %s2252 = scalar_lea.sflag [#allocation3], %s2251
        %s2253 = sand.u32 %s93, 1
        %s2254 = scalar_lea.vmem [#allocation2], %s2253
        // Predicated region
        $region33: #{occupancy_map.1} parent=31 // pred_check
          %p2255 = pneg %p103
        $region34: #{occupancy_map.1} parent=31 // pred_check_branch
          %2257 = sbr.rel (%p2255) target = $region36
        $region35: #{occupancy_map.1} parent=31 // pred_region
          %2259 = vsyncadd %s2252, 0
          %s2260 = scalar_lea.hbm %s3, %s17
          %s2262 = sshll.u32 %s2254, 4
          %s2263 = int_to_ptr.vmem [resolvable:$true] %s2262
          %s2264 = sshll.u32 %s2260, 4
          %s2265 = int_to_ptr.hbm [resolvable:$true] %s2264
          %2267 = dma.vmem_to_hbm [thread:$0]  %s2263, 16, %s2265, %s2252
        $region36: #{occupancy_map.1} parent=31 // pred_fallthru
          _
      $region32: #{occupancy_map.1} parent=5 // pred_fallthru
        _
      %p2268 = scmp.le.s32.totalorder 2, %s12
      // Predicated region
      $region37: #{occupancy_map.1} parent=5 // pred_check
        %p2269 = pneg %p2268
      $region38: #{occupancy_map.1} parent=5 // pred_check_branch
        %2271 = sbr.rel (%p2269) target = $region40
      $region39: #{occupancy_map.1} parent=5 // pred_region
        %s2272 = ssub.s32 %s12, 2
        // Predicated region
        $region41: #{occupancy_map.1} parent=39 // pred_check
          %p2273 = pneg %p109
        $region42: #{occupancy_map.1} parent=39 // pred_check_branch
          %2275 = sbr.rel (%p2273) target = $region44
        $region43: #{occupancy_map.1} parent=39 // pred_region
          %s2276 = sand.u32 %s94, 1
          %s2277 = scalar_lea.sflag [#allocation3], %s2276
          %s2278 = sand.u32 %s94, 1
          %s2279 = scalar_lea.vmem [#allocation2], %s2278
          %2281 = dma.done %s2277, 16
        $region44: #{occupancy_map.1} parent=39 // pred_fallthru
          _
      $region40: #{occupancy_map.1} parent=5 // pred_fallthru
        _
    $region6: #{occupancy_map.1} parent=1 // loop_footer
      %s16 = sadd.s32 1, %s12
    $region7: #{occupancy_map.1} parent=1 // loop_footer_branch
      %11 = sbr.rel target = $region3
    $region8: #{occupancy_map.1} parent=1 // loop_exit
      _
    %2282 = vsyncpa [#allocation3], 1
    %s2283 = scalar_lea.sflag [#allocation3], 1
    %2284 = vsyncpa %s2283, 1

</llo_original>
